<compile_context>
chip_gen: v5e
topology: v5e:2x2
jax: 0.10.0
libtpu: 0.0.40
codegen_flags: <defaults>
</compile_context>

<pallas_src>
import functools

import jax
import jax.numpy as jnp
from jax import lax
from jax.experimental import pallas as pl
from jax.experimental.pallas import tpu as pltpu

_LN_EPS = 1e-12

# Preferred tile sizes (multiples of 256 for the v6e/v7x MXU, 128-aligned for v5e).
_TM, _TN, _TK = 1024, 256, 512          # generic matmul tiles (M raised per review)
_TI, _TIC = 512, 256                    # FFN intermediate grid tile / in-kernel sub-chunk
_TQ, _TKV = 512, 512                    # flash-attention q / kv tiles
_TS = 128                               # pooling reduction tile over S


def _detect_vmem_limit():
    """<=48 MiB on the 64 MiB v7x part, ~96 MiB on 128 MiB v5e/v6e parts."""
    default = 48 * 1024 * 1024
    try:
        cap = int(pltpu.get_tpu_info().vmem_capacity_bytes)
    except Exception:  # pragma: no cover - conservative fallback
        return default
    return max(default, min(96 * 1024 * 1024, (cap * 3) // 4))


_VMEM_LIMIT = _detect_vmem_limit()


def _tile(dim, preferred):
    """Largest 128-aligned divisor of `dim` that is <= preferred (else the full dim)."""
    if dim <= preferred:
        return dim
    if dim % preferred == 0:
        return preferred
    t = (preferred // 128) * 128
    while t >= 128:
        if dim % t == 0:
            return t
        t -= 128
    # TODO(synk): pad awkward dims instead of falling back to the full dimension.
    return dim


def _cparams(sem=None):
    return pltpu.CompilerParams(dimension_semantics=sem,
                                vmem_limit_bytes=_VMEM_LIMIT)


# ------------------- fused QKV projection: planes (3, M, H) as separate outputs ------------------- #

def _qkv_kernel(x_ref, w_ref, b_ref, o_ref, acc_ref):
    kk = pl.program_id(3)

    @pl.when(kk == 0)
    def _():
        acc_ref[...] = jnp.zeros_like(acc_ref)

    acc_ref[...] += jnp.dot(x_ref[...], w_ref[0],
                            preferred_element_type=jnp.float32)

    @pl.when(kk == pl.num_programs(3) - 1)
    def _():
        o_ref[0] = (acc_ref[...] + b_ref[0]).astype(o_ref.dtype)


def qkv_projection(x, wqkv, bqkv, out_dtype=jnp.bfloat16):
    """x: (M, H); wqkv: (3, H, H); bqkv: (3, H)  ->  (3, M, H) planes [Q, K, V]."""
    m, k = x.shape
    h = wqkv.shape[2]
    tm, tn, tk = _tile(m, _TM), _tile(h, _TN), _tile(k, _TK)
    return pl.pallas_call(
        _qkv_kernel,
        out_shape=jax.ShapeDtypeStruct((3, m, h), out_dtype),
        grid=(3, m // tm, h // tn, k // tk),
        in_specs=[pl.BlockSpec((tm, tk), lambda p, i, j, kk: (i, kk)),
                  pl.BlockSpec((1, tk, tn), lambda p, i, j, kk: (p, kk, j)),
                  pl.BlockSpec((1, 1, tn), lambda p, i, j, kk: (p, 0, j))],
        out_specs=pl.BlockSpec((1, tm, tn), lambda p, i, j, kk: (p, i, j)),
        scratch_shapes=[pltpu.VMEM((tm, tn), jnp.float32)],
        compiler_params=_cparams(("parallel", "parallel", "parallel", "arbitrary")),
    )(x, wqkv, bqkv.reshape(3, 1, h))


# ----------------- tiled matmul with fused residual-add + LayerNorm epilogue ----------------- #

def _matmul_res_ln_kernel(x_ref, w_ref, b_ref, res_ref, g_ref, beta_ref, o_ref, acc_ref):
    kk = pl.program_id(1)

    @pl.when(kk == 0)
    def _():
        acc_ref[...] = jnp.zeros_like(acc_ref)

    acc_ref[...] += jnp.dot(x_ref[...], w_ref[...],
                            preferred_element_type=jnp.float32)

    @pl.when(kk == pl.num_programs(1) - 1)
    def _():
        y = acc_ref[...] + b_ref[...] + res_ref[...].astype(jnp.float32)
        mu = jnp.mean(y, axis=-1, keepdims=True)
        var = jnp.mean(jnp.square(y - mu), axis=-1, keepdims=True)
        yn = (y - mu) * lax.rsqrt(var + _LN_EPS)
        o_ref[...] = (yn * g_ref[...] + beta_ref[...]).astype(o_ref.dtype)


def matmul_residual_layernorm(x, w, b, residual, gamma, beta, out_dtype=jnp.bfloat16):
    m, k = x.shape
    n = w.shape[1]                 # full hidden width stays resident for the LN reduction
    tm, tk = _tile(m, _TM), _tile(k, _TK)
    return pl.pallas_call(
        _matmul_res_ln_kernel,
        out_shape=jax.ShapeDtypeStruct((m, n), out_dtype),
        grid=(m // tm, k // tk),
        in_specs=[pl.BlockSpec((tm, tk), lambda i, kk: (i, kk)),
                  pl.BlockSpec((tk, n), lambda i, kk: (kk, 0)),
                  pl.BlockSpec((1, n), lambda i, kk: (0, 0)),
                  pl.BlockSpec((tm, n), lambda i, kk: (i, 0)),
                  pl.BlockSpec((1, n), lambda i, kk: (0, 0)),
                  pl.BlockSpec((1, n), lambda i, kk: (0, 0))],
        out_specs=pl.BlockSpec((tm, n), lambda i, kk: (i, 0)),
        scratch_shapes=[pltpu.VMEM((tm, n), jnp.float32)],
        compiler_params=_cparams(("parallel", "arbitrary")),
    )(x, w, b.reshape(1, n), residual, gamma.reshape(1, n), beta.reshape(1, n))


# --------------- fused FFN: w1 -> GELU -> w2 (chunked) + residual + LayerNorm --------------- #

def _ffn_kernel(x_ref, w1_ref, b1_ref, w2_ref, b2_ref, g_ref, beta_ref, o_ref, acc_ref, *, tic):
    j = pl.program_id(1)

    @pl.when(j == 0)
    def _():
        acc_ref[...] = jnp.zeros_like(acc_ref)

    x = x_ref[...]
    ti = w1_ref.shape[1]
    # Sub-chunk the intermediate so the live (tm, tic) f32 GELU temporary stays small;
    # the (M, 4H) intermediate never touches HBM.
    for c0 in range(0, ti, tic):
        c1 = c0 + tic
        # TODO(synk): HF BERT uses exact erf-GELU; tanh approximation keeps lowering simple.
        hmid = (jnp.dot(x, w1_ref[:, c0:c1], preferred_element_type=jnp.float32)
                + b1_ref[:, c0:c1])
        hmid = jax.nn.gelu(hmid, approximate=True)
        acc_ref[...] += jnp.dot(hmid.astype(x.dtype), w2_ref[c0:c1, :],
                                preferred_element_type=jnp.float32)

    @pl.when(j == pl.num_programs(1) - 1)
    def _():
        y = acc_ref[...] + b2_ref[...] + x.astype(jnp.float32)
        mu = jnp.mean(y, axis=-1, keepdims=True)
        var = jnp.mean(jnp.square(y - mu), axis=-1, keepdims=True)
        yn = (y - mu) * lax.rsqrt(var + _LN_EPS)
        o_ref[...] = (yn * g_ref[...] + beta_ref[...]).astype(o_ref.dtype)


def ffn_fused(x, w1, b1, w2, b2, gamma, beta, out_dtype=jnp.bfloat16):
    m, h = x.shape
    inter = w1.shape[1]
    tm, ti = _tile(m, _TM), _tile(inter, _TI)
    tic = _TIC if ti % _TIC == 0 else ti
    kernel = functools.partial(_ffn_kernel, tic=tic)
    return pl.pallas_call(
        kernel,
        out_shape=jax.ShapeDtypeStruct((m, h), out_dtype),
        grid=(m // tm, inter // ti),
        in_specs=[pl.BlockSpec((tm, h), lambda i, j: (i, 0)),    # x row tile (also residual)
                  pl.BlockSpec((h, ti), lambda i, j: (0, j)),    # w1 chunk
                  pl.BlockSpec((1, ti), lambda i, j: (0, j)),    # b1 chunk
                  pl.BlockSpec((ti, h), lambda i, j: (j, 0)),    # w2 chunk
                  pl.BlockSpec((1, h), lambda i, j: (0, 0)),     # b2
                  pl.BlockSpec((1, h), lambda i, j: (0, 0)),     # gamma
                  pl.BlockSpec((1, h), lambda i, j: (0, 0))],    # beta
        out_specs=pl.BlockSpec((tm, h), lambda i, j: (i, 0)),
        scratch_shapes=[pltpu.VMEM((tm, h), jnp.float32)],
        compiler_params=_cparams(("parallel", "arbitrary")),
    )(x, w1, b1.reshape(1, inter), w2, b2.reshape(1, h),
      gamma.reshape(1, h), beta.reshape(1, h))


# ------------------------------- embedding LayerNorm ------------------------------- #

def _layernorm_kernel(x_ref, g_ref, b_ref, o_ref):
    x = x_ref[...].astype(jnp.float32)
    mu = jnp.mean(x, axis=-1, keepdims=True)
    var = jnp.mean(jnp.square(x - mu), axis=-1, keepdims=True)
    xn = (x - mu) * lax.rsqrt(var + _LN_EPS)
    o_ref[...] = (xn * g_ref[...] + b_ref[...]).astype(o_ref.dtype)


def layernorm(x, gamma, beta, out_dtype=jnp.bfloat16):
    m, h = x.shape
    tm = _tile(m, _TM)
    return pl.pallas_call(
        _layernorm_kernel,
        out_shape=jax.ShapeDtypeStruct((m, h), out_dtype),
        grid=(m // tm,),
        in_specs=[pl.BlockSpec((tm, h), lambda i: (i, 0)),
                  pl.BlockSpec((1, h), lambda i: (0, 0)),
                  pl.BlockSpec((1, h), lambda i: (0, 0))],
        out_specs=pl.BlockSpec((tm, h), lambda i: (i, 0)),
        compiler_params=_cparams(("parallel",)),
    )(x, gamma.reshape(1, h), beta.reshape(1, h))


# ------------------------------- flash attention ------------------------------- #

def _flash_attn_kernel(bias_ref, q_ref, k_ref, v_ref, o_ref,
                       m_sc, l_sc, acc_sc, *, num_heads, head_dim):
    ki = pl.program_id(2)

    @pl.when(ki == 0)
    def _():
        m_sc[...] = jnp.full_like(m_sc, -1e30)
        l_sc[...] = jnp.zeros_like(l_sc)
        acc_sc[...] = jnp.zeros_like(acc_sc)

    bias = bias_ref[0]                                  # (1, tkv) f32, shared by all heads
    # Hoisted softmax scale: one (tq, H) multiply instead of heads x (tq, tkv) multiplies.
    q_all = q_ref[0, 0] * (1.0 / (head_dim ** 0.5))     # (tq, H) bf16
    k_all = k_ref[0, 0]                                 # (tkv, H) bf16
    v_all = v_ref[0, 0]                                 # (tkv, H) bf16

    # TODO(synk): for many-head configs replace this static unroll with a lax.fori_loop
    # over heads (dynamic lane slices) to bound live ranges further.
    for h in range(num_heads):
        lo = h * head_dim
        q_h = q_all[:, lo:lo + head_dim]                                 # (tq, hd)
        k_h = k_all[:, lo:lo + head_dim]                                 # (tkv, hd)
        v_h = v_all[:, lo:lo + head_dim]                                 # (tkv, hd)

        s = lax.dot_general(q_h, k_h, (((1,), (1,)), ((), ())),
                            preferred_element_type=jnp.float32) + bias   # (tq, tkv)
        m_prev = m_sc[h]                                                 # (tq, 1)
        m_new = jnp.maximum(m_prev, jnp.max(s, axis=-1, keepdims=True))
        alpha = jnp.exp(m_prev - m_new)
        p = jnp.exp(s - m_new)
        l_sc[h] = alpha * l_sc[h] + jnp.sum(p, axis=-1, keepdims=True)
        # Full-tile, head-major accumulator update (no masked mid-vreg lane stores).
        acc_sc[h] = alpha * acc_sc[h] + jnp.dot(p.astype(v_h.dtype), v_h,
                                                preferred_element_type=jnp.float32)
        m_sc[h] = m_new

    @pl.when(ki == pl.num_programs(2) - 1)
    def _():
        # Lane-merge to the (tq, hidden) output layout only once, in the epilogue.
        for h in range(num_heads):
            lo = h * head_dim
            inv_l = pl.reciprocal(l_sc[h], approx=True)
            o_ref[0, :, lo:lo + head_dim] = (acc_sc[h] * inv_l).astype(o_ref.dtype)


def flash_attention(qkv, bias, *, num_heads):
    """qkv: (3, B, S, H) planes [Q, K, V] (bf16); bias: (B, 1, S) additive mask (f32)."""
    _, bsz, seq, hidden = qkv.shape
    head_dim = hidden // num_heads
    tq, tkv = _tile(seq, _TQ), _tile(seq, _TKV)
    kernel = functools.partial(_flash_attn_kernel, num_heads=num_heads, head_dim=head_dim)
    return pl.pallas_call(
        kernel,
        out_shape=jax.ShapeDtypeStruct((bsz, seq, hidden), qkv.dtype),
        grid=(bsz, seq // tq, seq // tkv),
        in_specs=[pl.BlockSpec((1, 1, tkv), lambda b, qi, ki: (b, 0, ki)),          # mask bias
                  pl.BlockSpec((1, 1, tq, hidden), lambda b, qi, ki: (0, b, qi, 0)),   # Q plane
                  pl.BlockSpec((1, 1, tkv, hidden), lambda b, qi, ki: (1, b, ki, 0)),  # K plane
                  pl.BlockSpec((1, 1, tkv, hidden), lambda b, qi, ki: (2, b, ki, 0))], # V plane
        out_specs=pl.BlockSpec((1, tq, hidden), lambda b, qi, ki: (b, qi, 0)),
        scratch_shapes=[pltpu.VMEM((num_heads, tq, 1), jnp.float32),          # running max
                        pltpu.VMEM((num_heads, tq, 1), jnp.float32),          # running denom
                        pltpu.VMEM((num_heads, tq, head_dim), jnp.float32)],  # head-major ctx acc
        compiler_params=_cparams(("parallel", "parallel", "arbitrary")),
    )(bias, qkv, qkv, qkv)


# ------------------------------- mean-pool + classifier head ------------------------------- #

def _pool_classify_kernel(seq_ref, role_ref, w_ref, b_ref, o_ref, acc_ref, *, inv_seq_len):
    si = pl.program_id(0)

    @pl.when(si == 0)
    def _():
        acc_ref[...] = jnp.zeros_like(acc_ref)

    acc_ref[...] += jnp.sum(seq_ref[...].astype(jnp.float32), axis=1)      # (B, H) partial sums

    @pl.when(si == pl.num_programs(0) - 1)
    def _():
        pooled = acc_ref[...] * inv_seq_len + role_ref[...]                # torch.mean + role emb
        o_ref[...] = (jnp.dot(pooled, w_ref[...], preferred_element_type=jnp.float32)
                      + b_ref[...])


def pool_and_classify(seq_out, role_emb, w_padded, b_padded):
    bsz, seq, hidden = seq_out.shape
    n_pad = w_padded.shape[1]                    # lane-dense (multiple of 128) output slab
    ts = _tile(seq, _TS)
    kernel = functools.partial(_pool_classify_kernel, inv_seq_len=1.0 / seq)
    return pl.pallas_call(
        kernel,
        out_shape=jax.ShapeDtypeStruct((bsz, n_pad), jnp.float32),
        grid=(seq // ts,),
        in_specs=[pl.BlockSpec((bsz, ts, hidden), lambda si: (0, si, 0)),
                  pl.BlockSpec((bsz, hidden), lambda si: (0, 0)),
                  pl.BlockSpec((hidden, n_pad), lambda si: (0, 0)),
                  pl.BlockSpec((1, n_pad), lambda si: (0, 0))],
        out_specs=pl.BlockSpec((bsz, n_pad), lambda si: (0, 0)),
        scratch_shapes=[pltpu.VMEM((bsz, hidden), jnp.float32)],
        compiler_params=_cparams(("arbitrary",)),
    )(seq_out, role_emb, w_padded, b_padded.reshape(1, n_pad))


# --------------------------------------- parameters --------------------------------------- #

def init_params(key, *, vocab_size, hidden, num_layers, num_heads, intermediate,
                max_pos, type_vocab, num_roles):
    del num_heads  # shapes don't depend on head count (hidden = heads * head_dim)

    def norm(k, shape, dtype=jnp.float32, scale=0.02):
        return (scale * jax.random.normal(k, shape, dtype=jnp.float32)).astype(dtype)

    keys = iter(jax.random.split(key, 8 + num_layers * 8))
    cls_pad = ((num_roles + 127) // 128) * 128
    cls_w = norm(next(keys), (hidden, num_roles))
    params = {
        "word_emb": norm(next(keys), (vocab_size, hidden)),
        "pos_emb": norm(next(keys), (max_pos, hidden)),
        "type_emb": norm(next(keys), (type_vocab, hidden)),
        "emb_ln_g": jnp.ones((hidden,), jnp.float32),
        "emb_ln_b": jnp.zeros((hidden,), jnp.float32),
        "role_emb": norm(next(keys), (num_roles, hidden)),            # nn.Embedding(num_roles, H)
        # nn.Linear(H, num_roles), zero-padded to a 128-lane output slab:
        "cls_w_pad": jnp.pad(cls_w, ((0, 0), (0, cls_pad - num_roles))),
        "cls_b_pad": jnp.zeros((cls_pad,), jnp.float32),
        "layers": [],
    }
    for _ in range(num_layers):
        wq = norm(next(keys), (hidden, hidden), jnp.bfloat16)
        wk = norm(next(keys), (hidden, hidden), jnp.bfloat16)
        wv = norm(next(keys), (hidden, hidden), jnp.bfloat16)
        params["layers"].append({
            "wqkv": jnp.stack([wq, wk, wv], axis=0),                  # (3, H, H) bf16 planes
            "bqkv": jnp.zeros((3, hidden), jnp.float32),
            "wo": norm(next(keys), (hidden, hidden), jnp.bfloat16),
            "bo": jnp.zeros((hidden,), jnp.float32),
            "ln1_g": jnp.ones((hidden,), jnp.float32),
            "ln1_b": jnp.zeros((hidden,), jnp.float32),
            "w1": norm(next(keys), (hidden, intermediate), jnp.bfloat16),
            "b1": jnp.zeros((intermediate,), jnp.float32),
            "w2": norm(next(keys), (intermediate, hidden), jnp.bfloat16),
            "b2": jnp.zeros((hidden,), jnp.float32),
            "ln2_g": jnp.ones((hidden,), jnp.float32),
            "ln2_b": jnp.zeros((hidden,), jnp.float32),
        })
    return params


# --------------------------------------- forward pass --------------------------------------- #

def role_aware_transformer_forward(params, input_ids, attention_mask, role_ids=None,
                                   *, num_heads):
    bsz, seq = input_ids.shape
    hidden = params["word_emb"].shape[1]
    num_roles = params["role_emb"].shape[0]

    # BERT embeddings (gathers are plain-JAX glue; the LayerNorm runs in a kernel).
    x = jnp.take(params["word_emb"], input_ids, axis=0)
    x = x + params["pos_emb"][None, :seq, :]
    x = x + params["type_emb"][0][None, None, :]          # token_type_ids implicitly zero
    x2 = layernorm(x.reshape(bsz * seq, hidden), params["emb_ln_g"], params["emb_ln_b"])

    # Additive attention bias (B, 1, S) — passed once, reused for every head / q tile.
    bias = ((1.0 - attention_mask.astype(jnp.float32)) * -1e4)[:, None, :]

    for lyr in params["layers"]:
        qkv = qkv_projection(x2, lyr["wqkv"], lyr["bqkv"])                  # (3, B*S, H) bf16
        ctx = flash_attention(qkv.reshape(3, bsz, seq, hidden), bias,
                              num_heads=num_heads)                          # (B, S, H)  bf16
        x2 = matmul_residual_layernorm(ctx.reshape(bsz * seq, hidden),
                                       lyr["wo"], lyr["bo"], x2,
                                       lyr["ln1_g"], lyr["ln1_b"])
        x2 = ffn_fused(x2, lyr["w1"], lyr["b1"], lyr["w2"], lyr["b2"],
                       lyr["ln2_g"], lyr["ln2_b"])

    sequence_output = x2.reshape(bsz, seq, hidden)

    if role_ids is not None:
        role_emb = jnp.take(params["role_emb"], role_ids, axis=0)           # (B, H)
    else:
        role_emb = jnp.zeros((bsz, hidden), jnp.float32)

    logits_pad = pool_and_classify(sequence_output, role_emb,
                                   params["cls_w_pad"], params["cls_b_pad"])
    return logits_pad[:, :num_roles]


# --------------------------------------- main --------------------------------------- #

if __name__ == "__main__":
    VOCAB, HIDDEN, LAYERS, HEADS, INTER, MAXPOS, ROLES = 100, 32, 2, 2, 64, 32, 4
    B, S = 2, 8

    key = jax.random.PRNGKey(0)
    pkey, dkey = jax.random.split(key)
    params = init_params(pkey, vocab_size=VOCAB, hidden=HIDDEN, num_layers=LAYERS,
                         num_heads=HEADS, intermediate=INTER, max_pos=MAXPOS,
                         type_vocab=2, num_roles=ROLES)

    k1, k2 = jax.random.split(dkey)
    input_ids = jax.random.randint(k1, (B, S), 0, VOCAB, dtype=jnp.int32)
    attention_mask = jnp.array([[1] * S, [1] * 6 + [0] * 2], dtype=jnp.int32)
    role_ids = jax.random.randint(k2, (B,), 0, ROLES, dtype=jnp.int32)

    fwd = jax.jit(functools.partial(role_aware_transformer_forward, num_heads=HEADS))
    logits = fwd(params, input_ids, attention_mask, role_ids)
    jax.block_until_ready(logits)
    assert logits.shape == (B, ROLES) and logits.dtype == jnp.float32
    assert bool(jnp.all(jnp.isfinite(logits)))
    print("KERNEL_OK")
</pallas_src>

<mosaic_0001>
module attributes {stable_mosaic.version = 11 : i64} {
  func.func @_layernorm_kernel(%arg0: i32, %arg1: memref<16x32xf32, #tpu.memory_space<vmem>>, %arg2: memref<1x32xf32, #tpu.memory_space<vmem>>, %arg3: memref<1x32xf32, #tpu.memory_space<vmem>>, %arg4: memref<16x32xbf16, #tpu.memory_space<vmem>>) attributes {dimension_semantics = [#tpu.dimension_semantics<parallel>], iteration_bounds = array<i64: 1>, scalar_prefetch = 0 : i64, scratch_operands = 0 : i64, tpu.core_type = #tpu.core_type<tc>, window_params = [{transform_indices = @transform_0, window_bounds = array<i64: 16, 32>}, {pipeline_mode = #tpu.pipeline_mode<synchronous>, transform_indices = @transform_1, window_bounds = array<i64: 1, 32>}, {pipeline_mode = #tpu.pipeline_mode<synchronous>, transform_indices = @transform_2, window_bounds = array<i64: 1, 32>}, {transform_indices = @transform_3, window_bounds = array<i64: 16, 32>}]} {
    %c0 = arith.constant 0 : index
    %c0_0 = arith.constant 0 : index
    %0 = vector.load %arg1[%c0, %c0_0] : memref<16x32xf32, #tpu.memory_space<vmem>>, vector<16x32xf32>
    %cst = arith.constant dense<0.000000e+00> : vector<16xf32>
    %1 = vector.multi_reduction <add>, %0, %cst [1] : vector<16x32xf32> to vector<16xf32>
    %2 = vector.shape_cast %1 : vector<16xf32> to vector<16x1xf32>
    %cst_1 = arith.constant 3.200000e+01 : f32
    %3 = vector.broadcast %cst_1 : f32 to vector<16x1xf32>
    %4 = arith.divf %2, %3 : vector<16x1xf32>
    %5 = vector.broadcast %4 : vector<16x1xf32> to vector<16x32xf32>
    %6 = arith.subf %0, %5 : vector<16x32xf32>
    %7 = arith.mulf %6, %6 : vector<16x32xf32>
    %cst_2 = arith.constant dense<0.000000e+00> : vector<16xf32>
    %8 = vector.multi_reduction <add>, %7, %cst_2 [1] : vector<16x32xf32> to vector<16xf32>
    %9 = vector.shape_cast %8 : vector<16xf32> to vector<16x1xf32>
    %cst_3 = arith.constant 3.200000e+01 : f32
    %10 = vector.broadcast %cst_3 : f32 to vector<16x1xf32>
    %11 = arith.divf %9, %10 : vector<16x1xf32>
    %12 = vector.broadcast %4 : vector<16x1xf32> to vector<16x32xf32>
    %13 = arith.subf %0, %12 : vector<16x32xf32>
    %cst_4 = arith.constant 9.99999996E-13 : f32
    %14 = vector.broadcast %cst_4 : f32 to vector<16x1xf32>
    %15 = arith.addf %11, %14 : vector<16x1xf32>
    %16 = math.rsqrt %15 : vector<16x1xf32>
    %17 = vector.broadcast %16 : vector<16x1xf32> to vector<16x32xf32>
    %18 = arith.mulf %13, %17 : vector<16x32xf32>
    %c0_5 = arith.constant 0 : index
    %c0_6 = arith.constant 0 : index
    %19 = vector.load %arg2[%c0_5, %c0_6] : memref<1x32xf32, #tpu.memory_space<vmem>>, vector<1x32xf32>
    %20 = vector.broadcast %19 : vector<1x32xf32> to vector<16x32xf32>
    %21 = arith.mulf %18, %20 : vector<16x32xf32>
    %c0_7 = arith.constant 0 : index
    %c0_8 = arith.constant 0 : index
    %22 = vector.load %arg3[%c0_7, %c0_8] : memref<1x32xf32, #tpu.memory_space<vmem>>, vector<1x32xf32>
    %23 = vector.broadcast %22 : vector<1x32xf32> to vector<16x32xf32>
    %24 = arith.addf %21, %23 : vector<16x32xf32>
    %25 = arith.truncf %24 : vector<16x32xf32> to vector<16x32xbf16>
    %c0_9 = arith.constant 0 : index
    %c0_10 = arith.constant 0 : index
    %26 = vector.load %arg4[%c0_9, %c0_10] : memref<16x32xbf16, #tpu.memory_space<vmem>>, vector<16x32xbf16>
    tpu.vector_store %arg4[%c0_9, %c0_10], %25 {strides = array<i32>} : memref<16x32xbf16, #tpu.memory_space<vmem>>, vector<16x32xbf16>,
    return
  }
  func.func @transform_0(%arg0: i32) -> (i32, i32) {
    %c0_i32 = arith.constant 0 : i32
    %c0_i32_0 = arith.constant 0 : i32
    return %arg0, %c0_i32 : i32, i32
  }
  func.func @transform_1(%arg0: i32) -> (i32, i32) {
    %c0_i32 = arith.constant 0 : i32
    %c0_i32_0 = arith.constant 0 : i32
    %c0_i32_1 = arith.constant 0 : i32
    return %c0_i32, %c0_i32_0 : i32, i32
  }
  func.func @transform_2(%arg0: i32) -> (i32, i32) {
    %c0_i32 = arith.constant 0 : i32
    %c0_i32_0 = arith.constant 0 : i32
    %c0_i32_1 = arith.constant 0 : i32
    return %c0_i32, %c0_i32_0 : i32, i32
  }
  func.func @transform_3(%arg0: i32) -> (i32, i32) {
    %c0_i32 = arith.constant 0 : i32
    %c0_i32_0 = arith.constant 0 : i32
    return %arg0, %c0_i32 : i32, i32
  }
}

module attributes {stable_mosaic.version = 11 : i64} {
  func.func @_qkv_kernel(%arg0: i32, %arg1: i32, %arg2: i32, %arg3: i32, %arg4: memref<16x32xbf16, #tpu.memory_space<vmem>>, %arg5: memref<1x32x32xbf16, #tpu.memory_space<vmem>>, %arg6: memref<1x1x32xf32, #tpu.memory_space<vmem>>, %arg7: memref<1x16x32xbf16, #tpu.memory_space<vmem>>, %arg8: memref<16x32xf32, #tpu.memory_space<vmem>>) attributes {dimension_semantics = [#tpu.dimension_semantics<parallel>, #tpu.dimension_semantics<parallel>, #tpu.dimension_semantics<parallel>, #tpu.dimension_semantics<arbitrary>], iteration_bounds = array<i64: 3, 1, 1, 1>, scalar_prefetch = 0 : i64, scratch_operands = 1 : i64, tpu.core_type = #tpu.core_type<tc>, window_params = [{transform_indices = @transform_0, window_bounds = array<i64: 16, 32>}, {transform_indices = @transform_1, window_bounds = array<i64: 1, 32, 32>}, {transform_indices = @transform_2, window_bounds = array<i64: 1, 1, 32>}, {transform_indices = @transform_3, window_bounds = array<i64: 1, 16, 32>}]} {
    %c0_i32 = arith.constant 0 : i32
    %0 = arith.cmpi eq, %arg3, %c0_i32 : i32
    %1 = arith.extui %0 : i1 to i32
    %c0_i32_0 = arith.constant 0 : i32
    %2 = arith.cmpi ne, %1, %c0_i32_0 : i32
    scf.if %2 {
      %cst_11 = arith.constant 0.000000e+00 : f32
      %13 = vector.broadcast %cst_11 : f32 to vector<16x32xf32>
      %c0_12 = arith.constant 0 : index
      %c0_13 = arith.constant 0 : index
      %14 = vector.load %arg8[%c0_12, %c0_13] : memref<16x32xf32, #tpu.memory_space<vmem>>, vector<16x32xf32>
      tpu.vector_store %arg8[%c0_12, %c0_13], %13 {strides = array<i32>} : memref<16x32xf32, #tpu.memory_space<vmem>>, vector<16x32xf32>,
    } else {
    }
    %c0 = arith.constant 0 : index
    %c0_1 = arith.constant 0 : index
    %3 = vector.load %arg8[%c0, %c0_1] : memref<16x32xf32, #tpu.memory_space<vmem>>, vector<16x32xf32>
    %c0_2 = arith.constant 0 : index
    %c0_3 = arith.constant 0 : index
    %4 = vector.load %arg4[%c0_2, %c0_3] : memref<16x32xbf16, #tpu.memory_space<vmem>>, vector<16x32xbf16>
    %c0_4 = arith.constant 0 : index
    %c0_5 = arith.constant 0 : index
    %c0_6 = arith.constant 0 : index
    %5 = vector.load %arg5[%c0_4, %c0_5, %c0_6] : memref<1x32x32xbf16, #tpu.memory_space<vmem>>, vector<1x32x32xbf16>
    %6 = vector.shape_cast %5 : vector<1x32x32xbf16> to vector<32x32xbf16>
    %cst = arith.constant dense<0.000000e+00> : vector<16x32xf32>
    %7 = tpu.matmul %4, %6, %cst {dimension_numbers = #tpu.dot_dimension_numbers<[1], [0], [0], [1], [0, 0, 1, 1], [], []>} : vector<16x32xbf16>, vector<32x32xbf16>, vector<16x32xf32> -> vector<16x32xf32>
    %8 = arith.addf %3, %7 : vector<16x32xf32>
    %c0_7 = arith.constant 0 : index
    %c0_8 = arith.constant 0 : index
    %9 = vector.load %arg8[%c0_7, %c0_8] : memref<16x32xf32, #tpu.memory_space<vmem>>, vector<16x32xf32>
    tpu.vector_store %arg8[%c0_7, %c0_8], %8 {strides = array<i32>} : memref<16x32xf32, #tpu.memory_space<vmem>>, vector<16x32xf32>,
    %c0_i32_9 = arith.constant 0 : i32
    %10 = arith.cmpi eq, %arg3, %c0_i32_9 : i32
    %11 = arith.extui %10 : i1 to i32
    %c0_i32_10 = arith.constant 0 : i32
    %12 = arith.cmpi ne, %11, %c0_i32_10 : i32
    scf.if %12 {
      %c0_11 = arith.constant 0 : index
      %c0_12 = arith.constant 0 : index
      %13 = vector.load %arg8[%c0_11, %c0_12] : memref<16x32xf32, #tpu.memory_space<vmem>>, vector<16x32xf32>
      %c0_13 = arith.constant 0 : index
      %c0_14 = arith.constant 0 : index
      %c0_15 = arith.constant 0 : index
      %14 = vector.load %arg6[%c0_13, %c0_14, %c0_15] : memref<1x1x32xf32, #tpu.memory_space<vmem>>, vector<1x1x32xf32>
      %15 = vector.shape_cast %14 : vector<1x1x32xf32> to vector<1x32xf32>
      %16 = vector.broadcast %15 : vector<1x32xf32> to vector<16x32xf32>
      %17 = arith.addf %13, %16 : vector<16x32xf32>
      %18 = arith.truncf %17 : vector<16x32xf32> to vector<16x32xbf16>
      %c0_16 = arith.constant 0 : index
      %c0_17 = arith.constant 0 : index
      %c0_18 = arith.constant 0 : index
      %19 = vector.load %arg7[%c0_16, %c0_17, %c0_18] : memref<1x16x32xbf16, #tpu.memory_space<vmem>>, vector<1x16x32xbf16>
      %20 = vector.shape_cast %19 : vector<1x16x32xbf16> to vector<16x32xbf16>
      %21 = vector.shape_cast %18 : vector<16x32xbf16> to vector<1x16x32xbf16>
      tpu.vector_store %arg7[%c0_16, %c0_17, %c0_18], %21 {strides = array<i32>} : memref<1x16x32xbf16, #tpu.memory_space<vmem>>, vector<1x16x32xbf16>,
    } else {
    }
    return
  }
  func.func @transform_0(%arg0: i32, %arg1: i32, %arg2: i32, %arg3: i32) -> (i32, i32) {
    %c0_i32 = arith.constant 0 : i32
    return %arg1, %arg3 : i32, i32
  }
  func.func @transform_1(%arg0: i32, %arg1: i32, %arg2: i32, %arg3: i32) -> (i32, i32, i32) {
    %c0_i32 = arith.constant 0 : i32
    return %arg0, %arg3, %arg2 : i32, i32, i32
  }
  func.func @transform_2(%arg0: i32, %arg1: i32, %arg2: i32, %arg3: i32) -> (i32, i32, i32) {
    %c0_i32 = arith.constant 0 : i32
    %c0_i32_0 = arith.constant 0 : i32
    return %arg0, %c0_i32, %arg2 : i32, i32, i32
  }
  func.func @transform_3(%arg0: i32, %arg1: i32, %arg2: i32, %arg3: i32) -> (i32, i32, i32) {
    %c0_i32 = arith.constant 0 : i32
    return %arg0, %arg1, %arg2 : i32, i32, i32
  }
}

module attributes {stable_mosaic.version = 11 : i64} {
  func.func @_flash_attn_kernel(%arg0: i32, %arg1: i32, %arg2: i32, %arg3: memref<1x1x8xf32, #tpu.memory_space<vmem>>, %arg4: memref<1x1x8x32xbf16, #tpu.memory_space<vmem>>, %arg5: memref<1x1x8x32xbf16, #tpu.memory_space<vmem>>, %arg6: memref<1x1x8x32xbf16, #tpu.memory_space<vmem>>, %arg7: memref<1x8x32xbf16, #tpu.memory_space<vmem>>, %arg8: memref<2x8x1xf32, #tpu.memory_space<vmem>>, %arg9: memref<2x8x1xf32, #tpu.memory_space<vmem>>, %arg10: memref<2x8x16xf32, #tpu.memory_space<vmem>>) attributes {dimension_semantics = [#tpu.dimension_semantics<parallel>, #tpu.dimension_semantics<parallel>, #tpu.dimension_semantics<arbitrary>], iteration_bounds = array<i64: 2, 1, 1>, scalar_prefetch = 0 : i64, scratch_operands = 3 : i64, tpu.core_type = #tpu.core_type<tc>, window_params = [{transform_indices = @transform_0, window_bounds = array<i64: 1, 1, 8>}, {transform_indices = @transform_1, window_bounds = array<i64: 1, 1, 8, 32>}, {transform_indices = @transform_2, window_bounds = array<i64: 1, 1, 8, 32>}, {transform_indices = @transform_3, window_bounds = array<i64: 1, 1, 8, 32>}, {transform_indices = @transform_4, window_bounds = array<i64: 1, 8, 32>}]} {
    %c0_i32 = arith.constant 0 : i32
    %0 = arith.cmpi eq, %arg2, %c0_i32 : i32
    %1 = arith.extui %0 : i1 to i32
    %c0_i32_0 = arith.constant 0 : i32
    %2 = arith.cmpi ne, %1, %c0_i32_0 : i32
    scf.if %2 {
      %cst_60 = arith.constant -1.000000e+30 : f32
      %92 = vector.broadcast %cst_60 : f32 to vector<2x8x1xf32>
      %c0_61 = arith.constant 0 : index
      %c0_62 = arith.constant 0 : index
      %c0_63 = arith.constant 0 : index
      %93 = vector.load %arg8[%c0_61, %c0_62, %c0_63] : memref<2x8x1xf32, #tpu.memory_space<vmem>>, vector<2x8x1xf32>
      tpu.vector_store %arg8[%c0_61, %c0_62, %c0_63], %92 {strides = array<i32>} : memref<2x8x1xf32, #tpu.memory_space<vmem>>, vector<2x8x1xf32>,
      %cst_64 = arith.constant 0.000000e+00 : f32
      %94 = vector.broadcast %cst_64 : f32 to vector<2x8x1xf32>
      %c0_65 = arith.constant 0 : index
      %c0_66 = arith.constant 0 : index
      %c0_67 = arith.constant 0 : index
      %95 = vector.load %arg9[%c0_65, %c0_66, %c0_67] : memref<2x8x1xf32, #tpu.memory_space<vmem>>, vector<2x8x1xf32>
      tpu.vector_store %arg9[%c0_65, %c0_66, %c0_67], %94 {strides = array<i32>} : memref<2x8x1xf32, #tpu.memory_space<vmem>>, vector<2x8x1xf32>,
      %cst_68 = arith.constant 0.000000e+00 : f32
      %96 = vector.broadcast %cst_68 : f32 to vector<2x8x16xf32>
      %c0_69 = arith.constant 0 : index
      %c0_70 = arith.constant 0 : index
      %c0_71 = arith.constant 0 : index
      %97 = vector.load %arg10[%c0_69, %c0_70, %c0_71] : memref<2x8x16xf32, #tpu.memory_space<vmem>>, vector<2x8x16xf32>
      tpu.vector_store %arg10[%c0_69, %c0_70, %c0_71], %96 {strides = array<i32>} : memref<2x8x16xf32, #tpu.memory_space<vmem>>, vector<2x8x16xf32>,
    } else {
    }
    %c0 = arith.constant 0 : index
    %c0_1 = arith.constant 0 : index
    %c0_2 = arith.constant 0 : index
    %3 = vector.load %arg3[%c0, %c0_1, %c0_2] : memref<1x1x8xf32, #tpu.memory_space<vmem>>, vector<1x1x8xf32>
    %4 = vector.shape_cast %3 : vector<1x1x8xf32> to vector<1x8xf32>
    %c0_3 = arith.constant 0 : index
    %c0_4 = arith.constant 0 : index
    %c0_5 = arith.constant 0 : index
    %c0_6 = arith.constant 0 : index
    %5 = vector.load %arg4[%c0_3, %c0_4, %c0_5, %c0_6] : memref<1x1x8x32xbf16, #tpu.memory_space<vmem>>, vector<1x1x8x32xbf16>
    %6 = vector.shape_cast %5 : vector<1x1x8x32xbf16> to vector<8x32xbf16>
    %cst = arith.constant 2.500000e-01 : bf16
    %7 = vector.broadcast %cst : bf16 to vector<8x32xbf16>
    %8 = arith.mulf %6, %7 : vector<8x32xbf16>
    %c0_7 = arith.constant 0 : index
    %c0_8 = arith.constant 0 : index
    %c0_9 = arith.constant 0 : index
    %c0_10 = arith.constant 0 : index
    %9 = vector.load %arg5[%c0_7, %c0_8, %c0_9, %c0_10] : memref<1x1x8x32xbf16, #tpu.memory_space<vmem>>, vector<1x1x8x32xbf16>
    %10 = vector.shape_cast %9 : vector<1x1x8x32xbf16> to vector<8x32xbf16>
    %c0_11 = arith.constant 0 : index
    %c0_12 = arith.constant 0 : index
    %c0_13 = arith.constant 0 : index
    %c0_14 = arith.constant 0 : index
    %11 = vector.load %arg6[%c0_11, %c0_12, %c0_13, %c0_14] : memref<1x1x8x32xbf16, #tpu.memory_space<vmem>>, vector<1x1x8x32xbf16>
    %12 = vector.shape_cast %11 : vector<1x1x8x32xbf16> to vector<8x32xbf16>
    %13 = vector.extract_strided_slice %8 {offsets = [0, 0], sizes = [8, 16], strides = [1, 1]} : vector<8x32xbf16> to vector<8x16xbf16>
    %14 = vector.extract_strided_slice %10 {offsets = [0, 0], sizes = [8, 16], strides = [1, 1]} : vector<8x32xbf16> to vector<8x16xbf16>
    %15 = vector.extract_strided_slice %12 {offsets = [0, 0], sizes = [8, 16], strides = [1, 1]} : vector<8x32xbf16> to vector<8x16xbf16>
    %cst_15 = arith.constant dense<0.000000e+00> : vector<8x8xf32>
    %16 = tpu.matmul %13, %14, %cst_15 {dimension_numbers = #tpu.dot_dimension_numbers<[1], [1], [0], [0], [0, 0, 1, 0], [], []>} : vector<8x16xbf16>, vector<8x16xbf16>, vector<8x8xf32> -> vector<8x8xf32>
    %17 = vector.broadcast %4 : vector<1x8xf32> to vector<8x8xf32>
    %18 = arith.addf %16, %17 : vector<8x8xf32>
    %c0_16 = arith.constant 0 : index
    %c0_17 = arith.constant 0 : index
    %c0_18 = arith.constant 0 : index
    %19 = vector.load %arg8[%c0_16, %c0_17, %c0_18] : memref<2x8x1xf32, #tpu.memory_space<vmem>>, vector<1x8x1xf32>
    %20 = vector.shape_cast %19 : vector<1x8x1xf32> to vector<8x1xf32>
    %cst_19 = arith.constant dense<0xFF800000> : vector<8xf32>
    %21 = vector.multi_reduction <maximumf>, %18, %cst_19 [1] : vector<8x8xf32> to vector<8xf32>
    %22 = vector.shape_cast %21 : vector<8xf32> to vector<8x1xf32>
    %23 = arith.maximumf %20, %22 : vector<8x1xf32>
    %24 = arith.subf %20, %23 : vector<8x1xf32>
    %25 = math.exp %24 : vector<8x1xf32>
    %26 = vector.broadcast %23 : vector<8x1xf32> to vector<8x8xf32>
    %27 = arith.subf %18, %26 : vector<8x8xf32>
    %28 = math.exp %27 : vector<8x8xf32>
    %c0_20 = arith.constant 0 : index
    %c0_21 = arith.constant 0 : index
    %c0_22 = arith.constant 0 : index
    %29 = vector.load %arg9[%c0_20, %c0_21, %c0_22] : memref<2x8x1xf32, #tpu.memory_space<vmem>>, vector<1x8x1xf32>
    %30 = vector.shape_cast %29 : vector<1x8x1xf32> to vector<8x1xf32>
    %31 = arith.mulf %25, %30 : vector<8x1xf32>
    %cst_23 = arith.constant dense<0.000000e+00> : vector<8xf32>
    %32 = vector.multi_reduction <add>, %28, %cst_23 [1] : vector<8x8xf32> to vector<8xf32>
    %33 = vector.shape_cast %32 : vector<8xf32> to vector<8x1xf32>
    %34 = arith.addf %31, %33 : vector<8x1xf32>
    %c0_24 = arith.constant 0 : index
    %c0_25 = arith.constant 0 : index
    %c0_26 = arith.constant 0 : index
    %35 = vector.load %arg9[%c0_24, %c0_25, %c0_26] : memref<2x8x1xf32, #tpu.memory_space<vmem>>, vector<1x8x1xf32>
    %36 = vector.shape_cast %35 : vector<1x8x1xf32> to vector<8x1xf32>
    %37 = vector.shape_cast %34 : vector<8x1xf32> to vector<1x8x1xf32>
    tpu.vector_store %arg9[%c0_24, %c0_25, %c0_26], %37 {strides = array<i32>} : memref<2x8x1xf32, #tpu.memory_space<vmem>>, vector<1x8x1xf32>,
    %c0_27 = arith.constant 0 : index
    %c0_28 = arith.constant 0 : index
    %c0_29 = arith.constant 0 : index
    %38 = vector.load %arg10[%c0_27, %c0_28, %c0_29] : memref<2x8x16xf32, #tpu.memory_space<vmem>>, vector<1x8x16xf32>
    %39 = vector.shape_cast %38 : vector<1x8x16xf32> to vector<8x16xf32>
    %40 = vector.broadcast %25 : vector<8x1xf32> to vector<8x16xf32>
    %41 = arith.mulf %40, %39 : vector<8x16xf32>
    %42 = arith.truncf %28 : vector<8x8xf32> to vector<8x8xbf16>
    %cst_30 = arith.constant dense<0.000000e+00> : vector<8x16xf32>
    %43 = tpu.matmul %42, %15, %cst_30 {dimension_numbers = #tpu.dot_dimension_numbers<[1], [0], [0], [1], [0, 0, 1, 1], [], []>} : vector<8x8xbf16>, vector<8x16xbf16>, vector<8x16xf32> -> vector<8x16xf32>
    %44 = arith.addf %41, %43 : vector<8x16xf32>
    %c0_31 = arith.constant 0 : index
    %c0_32 = arith.constant 0 : index
    %c0_33 = arith.constant 0 : index
    %45 = vector.load %arg10[%c0_31, %c0_32, %c0_33] : memref<2x8x16xf32, #tpu.memory_space<vmem>>, vector<1x8x16xf32>
    %46 = vector.shape_cast %45 : vector<1x8x16xf32> to vector<8x16xf32>
    %47 = vector.shape_cast %44 : vector<8x16xf32> to vector<1x8x16xf32>
    tpu.vector_store %arg10[%c0_31, %c0_32, %c0_33], %47 {strides = array<i32>} : memref<2x8x16xf32, #tpu.memory_space<vmem>>, vector<1x8x16xf32>,
    %c0_34 = arith.constant 0 : index
    %c0_35 = arith.constant 0 : index
    %c0_36 = arith.constant 0 : index
    %48 = vector.load %arg8[%c0_34, %c0_35, %c0_36] : memref<2x8x1xf32, #tpu.memory_space<vmem>>, vector<1x8x1xf32>
    %49 = vector.shape_cast %48 : vector<1x8x1xf32> to vector<8x1xf32>
    %50 = vector.shape_cast %23 : vector<8x1xf32> to vector<1x8x1xf32>
    tpu.vector_store %arg8[%c0_34, %c0_35, %c0_36], %50 {strides = array<i32>} : memref<2x8x1xf32, #tpu.memory_space<vmem>>, vector<1x8x1xf32>,
    %51 = vector.extract_strided_slice %8 {offsets = [0, 16], sizes = [8, 16], strides = [1, 1]} : vector<8x32xbf16> to vector<8x16xbf16>
    %52 = vector.extract_strided_slice %10 {offsets = [0, 16], sizes = [8, 16], strides = [1, 1]} : vector<8x32xbf16> to vector<8x16xbf16>
    %53 = vector.extract_strided_slice %12 {offsets = [0, 16], sizes = [8, 16], strides = [1, 1]} : vector<8x32xbf16> to vector<8x16xbf16>
    %cst_37 = arith.constant dense<0.000000e+00> : vector<8x8xf32>
    %54 = tpu.matmul %51, %52, %cst_37 {dimension_numbers = #tpu.dot_dimension_numbers<[1], [1], [0], [0], [0, 0, 1, 0], [], []>} : vector<8x16xbf16>, vector<8x16xbf16>, vector<8x8xf32> -> vector<8x8xf32>
    %55 = vector.broadcast %4 : vector<1x8xf32> to vector<8x8xf32>
    %56 = arith.addf %54, %55 : vector<8x8xf32>
    %c1 = arith.constant 1 : index
    %c0_38 = arith.constant 0 : index
    %c0_39 = arith.constant 0 : index
    %57 = vector.load %arg8[%c1, %c0_38, %c0_39] : memref<2x8x1xf32, #tpu.memory_space<vmem>>, vector<1x8x1xf32>
    %58 = vector.shape_cast %57 : vector<1x8x1xf32> to vector<8x1xf32>
    %cst_40 = arith.constant dense<0xFF800000> : vector<8xf32>
    %59 = vector.multi_reduction <maximumf>, %56, %cst_40 [1] : vector<8x8xf32> to vector<8xf32>
    %60 = vector.shape_cast %59 : vector<8xf32> to vector<8x1xf32>
    %61 = arith.maximumf %58, %60 : vector<8x1xf32>
    %62 = arith.subf %58, %61 : vector<8x1xf32>
    %63 = math.exp %62 : vector<8x1xf32>
    %64 = vector.broadcast %61 : vector<8x1xf32> to vector<8x8xf32>
    %65 = arith.subf %56, %64 : vector<8x8xf32>
    %66 = math.exp %65 : vector<8x8xf32>
    %c1_41 = arith.constant 1 : index
    %c0_42 = arith.constant 0 : index
    %c0_43 = arith.constant 0 : index
    %67 = vector.load %arg9[%c1_41, %c0_42, %c0_43] : memref<2x8x1xf32, #tpu.memory_space<vmem>>, vector<1x8x1xf32>
    %68 = vector.shape_cast %67 : vector<1x8x1xf32> to vector<8x1xf32>
    %69 = arith.mulf %63, %68 : vector<8x1xf32>
    %cst_44 = arith.constant dense<0.000000e+00> : vector<8xf32>
    %70 = vector.multi_reduction <add>, %66, %cst_44 [1] : vector<8x8xf32> to vector<8xf32>
    %71 = vector.shape_cast %70 : vector<8xf32> to vector<8x1xf32>
    %72 = arith.addf %69, %71 : vector<8x1xf32>
    %c1_45 = arith.constant 1 : index
    %c0_46 = arith.constant 0 : index
    %c0_47 = arith.constant 0 : index
    %73 = vector.load %arg9[%c1_45, %c0_46, %c0_47] : memref<2x8x1xf32, #tpu.memory_space<vmem>>, vector<1x8x1xf32>
    %74 = vector.shape_cast %73 : vector<1x8x1xf32> to vector<8x1xf32>
    %75 = vector.shape_cast %72 : vector<8x1xf32> to vector<1x8x1xf32>
    tpu.vector_store %arg9[%c1_45, %c0_46, %c0_47], %75 {strides = array<i32>} : memref<2x8x1xf32, #tpu.memory_space<vmem>>, vector<1x8x1xf32>,
    %c1_48 = arith.constant 1 : index
    %c0_49 = arith.constant 0 : index
    %c0_50 = arith.constant 0 : index
    %76 = vector.load %arg10[%c1_48, %c0_49, %c0_50] : memref<2x8x16xf32, #tpu.memory_space<vmem>>, vector<1x8x16xf32>
    %77 = vector.shape_cast %76 : vector<1x8x16xf32> to vector<8x16xf32>
    %78 = vector.broadcast %63 : vector<8x1xf32> to vector<8x16xf32>
    %79 = arith.mulf %78, %77 : vector<8x16xf32>
    %80 = arith.truncf %66 : vector<8x8xf32> to vector<8x8xbf16>
    %cst_51 = arith.constant dense<0.000000e+00> : vector<8x16xf32>
    %81 = tpu.matmul %80, %53, %cst_51 {dimension_numbers = #tpu.dot_dimension_numbers<[1], [0], [0], [1], [0, 0, 1, 1], [], []>} : vector<8x8xbf16>, vector<8x16xbf16>, vector<8x16xf32> -> vector<8x16xf32>
    %82 = arith.addf %79, %81 : vector<8x16xf32>
    %c1_52 = arith.constant 1 : index
    %c0_53 = arith.constant 0 : index
    %c0_54 = arith.constant 0 : index
    %83 = vector.load %arg10[%c1_52, %c0_53, %c0_54] : memref<2x8x16xf32, #tpu.memory_space<vmem>>, vector<1x8x16xf32>
    %84 = vector.shape_cast %83 : vector<1x8x16xf32> to vector<8x16xf32>
    %85 = vector.shape_cast %82 : vector<8x16xf32> to vector<1x8x16xf32>
    tpu.vector_store %arg10[%c1_52, %c0_53, %c0_54], %85 {strides = array<i32>} : memref<2x8x16xf32, #tpu.memory_space<vmem>>, vector<1x8x16xf32>,
    %c1_55 = arith.constant 1 : index
    %c0_56 = arith.constant 0 : index
    %c0_57 = arith.constant 0 : index
    %86 = vector.load %arg8[%c1_55, %c0_56, %c0_57] : memref<2x8x1xf32, #tpu.memory_space<vmem>>, vector<1x8x1xf32>
    %87 = vector.shape_cast %86 : vector<1x8x1xf32> to vector<8x1xf32>
    %88 = vector.shape_cast %61 : vector<8x1xf32> to vector<1x8x1xf32>
    tpu.vector_store %arg8[%c1_55, %c0_56, %c0_57], %88 {strides = array<i32>} : memref<2x8x1xf32, #tpu.memory_space<vmem>>, vector<1x8x1xf32>,
    %c0_i32_58 = arith.constant 0 : i32
    %89 = arith.cmpi eq, %arg2, %c0_i32_58 : i32
    %90 = arith.extui %89 : i1 to i32
    %c0_i32_59 = arith.constant 0 : i32
    %91 = arith.cmpi ne, %90, %c0_i32_59 : i32
    scf.if %91 {
      %c0_60 = arith.constant 0 : index
      %c0_61 = arith.constant 0 : index
      %c0_62 = arith.constant 0 : index
      %92 = vector.load %arg9[%c0_60, %c0_61, %c0_62] : memref<2x8x1xf32, #tpu.memory_space<vmem>>, vector<1x8x1xf32>
      %93 = vector.shape_cast %92 : vector<1x8x1xf32> to vector<8x1xf32>
      %94 = tpu.reciprocal %93 {approx = true} : vector<8x1xf32> -> vector<8x1xf32>
      %c0_63 = arith.constant 0 : index
      %c0_64 = arith.constant 0 : index
      %c0_65 = arith.constant 0 : index
      %95 = vector.load %arg10[%c0_63, %c0_64, %c0_65] : memref<2x8x16xf32, #tpu.memory_space<vmem>>, vector<1x8x16xf32>
      %96 = vector.shape_cast %95 : vector<1x8x16xf32> to vector<8x16xf32>
      %97 = vector.broadcast %94 : vector<8x1xf32> to vector<8x16xf32>
      %98 = arith.mulf %96, %97 : vector<8x16xf32>
      %99 = arith.truncf %98 : vector<8x16xf32> to vector<8x16xbf16>
      %c0_66 = arith.constant 0 : index
      %c0_67 = arith.constant 0 : index
      %c0_68 = arith.constant 0 : index
      %100 = vector.load %arg7[%c0_66, %c0_67, %c0_68] : memref<1x8x32xbf16, #tpu.memory_space<vmem>>, vector<1x8x16xbf16>
      %101 = vector.shape_cast %100 : vector<1x8x16xbf16> to vector<8x16xbf16>
      %102 = vector.shape_cast %99 : vector<8x16xbf16> to vector<1x8x16xbf16>
      tpu.vector_store %arg7[%c0_66, %c0_67, %c0_68], %102 {strides = array<i32>} : memref<1x8x32xbf16, #tpu.memory_space<vmem>>, vector<1x8x16xbf16>,
      %c1_69 = arith.constant 1 : index
      %c0_70 = arith.constant 0 : index
      %c0_71 = arith.constant 0 : index
      %103 = vector.load %arg9[%c1_69, %c0_70, %c0_71] : memref<2x8x1xf32, #tpu.memory_space<vmem>>, vector<1x8x1xf32>
      %104 = vector.shape_cast %103 : vector<1x8x1xf32> to vector<8x1xf32>
      %105 = tpu.reciprocal %104 {approx = true} : vector<8x1xf32> -> vector<8x1xf32>
      %c1_72 = arith.constant 1 : index
      %c0_73 = arith.constant 0 : index
      %c0_74 = arith.constant 0 : index
      %106 = vector.load %arg10[%c1_72, %c0_73, %c0_74] : memref<2x8x16xf32, #tpu.memory_space<vmem>>, vector<1x8x16xf32>
      %107 = vector.shape_cast %106 : vector<1x8x16xf32> to vector<8x16xf32>
      %108 = vector.broadcast %105 : vector<8x1xf32> to vector<8x16xf32>
      %109 = arith.mulf %107, %108 : vector<8x16xf32>
      %110 = arith.truncf %109 : vector<8x16xf32> to vector<8x16xbf16>
      %c0_75 = arith.constant 0 : index
      %c0_76 = arith.constant 0 : index
      %c16 = arith.constant 16 : index
      %111 = vector.load %arg7[%c0_75, %c0_76, %c16] : memref<1x8x32xbf16, #tpu.memory_space<vmem>>, vector<1x8x16xbf16>
      %112 = vector.shape_cast %111 : vector<1x8x16xbf16> to vector<8x16xbf16>
      %113 = vector.shape_cast %110 : vector<8x16xbf16> to vector<1x8x16xbf16>
      tpu.vector_store %arg7[%c0_75, %c0_76, %c16], %113 {strides = array<i32>} : memref<1x8x32xbf16, #tpu.memory_space<vmem>>, vector<1x8x16xbf16>,
    } else {
    }
    return
  }
  func.func @transform_0(%arg0: i32, %arg1: i32, %arg2: i32) -> (i32, i32, i32) {
    %c0_i32 = arith.constant 0 : i32
    %c0_i32_0 = arith.constant 0 : i32
    return %arg0, %c0_i32, %arg2 : i32, i32, i32
  }
  func.func @transform_1(%arg0: i32, %arg1: i32, %arg2: i32) -> (i32, i32, i32, i32) {
    %c0_i32 = arith.constant 0 : i32
    %c0_i32_0 = arith.constant 0 : i32
    %c0_i32_1 = arith.constant 0 : i32
    return %c0_i32, %arg0, %arg1, %c0_i32_0 : i32, i32, i32, i32
  }
  func.func @transform_2(%arg0: i32, %arg1: i32, %arg2: i32) -> (i32, i32, i32, i32) {
    %c1_i32 = arith.constant 1 : i32
    %c0_i32 = arith.constant 0 : i32
    %c0_i32_0 = arith.constant 0 : i32
    return %c1_i32, %arg0, %arg2, %c0_i32 : i32, i32, i32, i32
  }
  func.func @transform_3(%arg0: i32, %arg1: i32, %arg2: i32) -> (i32, i32, i32, i32) {
    %c2_i32 = arith.constant 2 : i32
    %c0_i32 = arith.constant 0 : i32
    %c0_i32_0 = arith.constant 0 : i32
    return %c2_i32, %arg0, %arg2, %c0_i32 : i32, i32, i32, i32
  }
  func.func @transform_4(%arg0: i32, %arg1: i32, %arg2: i32) -> (i32, i32, i32) {
    %c0_i32 = arith.constant 0 : i32
    %c0_i32_0 = arith.constant 0 : i32
    return %arg0, %arg1, %c0_i32 : i32, i32, i32
  }
}

module attributes {stable_mosaic.version = 11 : i64} {
  func.func @_matmul_res_ln_kernel(%arg0: i32, %arg1: i32, %arg2: memref<16x32xbf16, #tpu.memory_space<vmem>>, %arg3: memref<32x32xbf16, #tpu.memory_space<vmem>>, %arg4: memref<1x32xf32, #tpu.memory_space<vmem>>, %arg5: memref<16x32xbf16, #tpu.memory_space<vmem>>, %arg6: memref<1x32xf32, #tpu.memory_space<vmem>>, %arg7: memref<1x32xf32, #tpu.memory_space<vmem>>, %arg8: memref<16x32xbf16, #tpu.memory_space<vmem>>, %arg9: memref<16x32xf32, #tpu.memory_space<vmem>>) attributes {dimension_semantics = [#tpu.dimension_semantics<parallel>, #tpu.dimension_semantics<arbitrary>], iteration_bounds = array<i64: 1, 1>, scalar_prefetch = 0 : i64, scratch_operands = 1 : i64, tpu.core_type = #tpu.core_type<tc>, window_params = [{transform_indices = @transform_0, window_bounds = array<i64: 16, 32>}, {transform_indices = @transform_1, window_bounds = array<i64: 32, 32>}, {pipeline_mode = #tpu.pipeline_mode<synchronous>, transform_indices = @transform_2, window_bounds = array<i64: 1, 32>}, {transform_indices = @transform_3, window_bounds = array<i64: 16, 32>}, {pipeline_mode = #tpu.pipeline_mode<synchronous>, transform_indices = @transform_4, window_bounds = array<i64: 1, 32>}, {pipeline_mode = #tpu.pipeline_mode<synchronous>, transform_indices = @transform_5, window_bounds = array<i64: 1, 32>}, {transform_indices = @transform_6, window_bounds = array<i64: 16, 32>}]} {
    %c0_i32 = arith.constant 0 : i32
    %0 = arith.cmpi eq, %arg1, %c0_i32 : i32
    %1 = arith.extui %0 : i1 to i32
    %c0_i32_0 = arith.constant 0 : i32
    %2 = arith.cmpi ne, %1, %c0_i32_0 : i32
    scf.if %2 {
      %cst_10 = arith.constant 0.000000e+00 : f32
      %12 = vector.broadcast %cst_10 : f32 to vector<16x32xf32>
      %c0_11 = arith.constant 0 : index
      %c0_12 = arith.constant 0 : index
      %13 = vector.load %arg9[%c0_11, %c0_12] : memref<16x32xf32, #tpu.memory_space<vmem>>, vector<16x32xf32>
      tpu.vector_store %arg9[%c0_11, %c0_12], %12 {strides = array<i32>} : memref<16x32xf32, #tpu.memory_space<vmem>>, vector<16x32xf32>,
    } else {
    }
    %c0 = arith.constant 0 : index
    %c0_1 = arith.constant 0 : index
    %3 = vector.load %arg9[%c0, %c0_1] : memref<16x32xf32, #tpu.memory_space<vmem>>, vector<16x32xf32>
    %c0_2 = arith.constant 0 : index
    %c0_3 = arith.constant 0 : index
    %4 = vector.load %arg2[%c0_2, %c0_3] : memref<16x32xbf16, #tpu.memory_space<vmem>>, vector<16x32xbf16>
    %c0_4 = arith.constant 0 : index
    %c0_5 = arith.constant 0 : index
    %5 = vector.load %arg3[%c0_4, %c0_5] : memref<32x32xbf16, #tpu.memory_space<vmem>>, vector<32x32xbf16>
    %cst = arith.constant dense<0.000000e+00> : vector<16x32xf32>
    %6 = tpu.matmul %4, %5, %cst {dimension_numbers = #tpu.dot_dimension_numbers<[1], [0], [0], [1], [0, 0, 1, 1], [], []>} : vector<16x32xbf16>, vector<32x32xbf16>, vector<16x32xf32> -> vector<16x32xf32>
    %7 = arith.addf %3, %6 : vector<16x32xf32>
    %c0_6 = arith.constant 0 : index
    %c0_7 = arith.constant 0 : index
    %8 = vector.load %arg9[%c0_6, %c0_7] : memref<16x32xf32, #tpu.memory_space<vmem>>, vector<16x32xf32>
    tpu.vector_store %arg9[%c0_6, %c0_7], %7 {strides = array<i32>} : memref<16x32xf32, #tpu.memory_space<vmem>>, vector<16x32xf32>,
    %c0_i32_8 = arith.constant 0 : i32
    %9 = arith.cmpi eq, %arg1, %c0_i32_8 : i32
    %10 = arith.extui %9 : i1 to i32
    %c0_i32_9 = arith.constant 0 : i32
    %11 = arith.cmpi ne, %10, %c0_i32_9 : i32
    scf.if %11 {
      %c0_10 = arith.constant 0 : index
      %c0_11 = arith.constant 0 : index
      %12 = vector.load %arg9[%c0_10, %c0_11] : memref<16x32xf32, #tpu.memory_space<vmem>>, vector<16x32xf32>
      %c0_12 = arith.constant 0 : index
      %c0_13 = arith.constant 0 : index
      %13 = vector.load %arg4[%c0_12, %c0_13] : memref<1x32xf32, #tpu.memory_space<vmem>>, vector<1x32xf32>
      %14 = vector.broadcast %13 : vector<1x32xf32> to vector<16x32xf32>
      %15 = arith.addf %12, %14 : vector<16x32xf32>
      %c0_14 = arith.constant 0 : index
      %c0_15 = arith.constant 0 : index
      %16 = vector.load %arg5[%c0_14, %c0_15] : memref<16x32xbf16, #tpu.memory_space<vmem>>, vector<16x32xbf16>
      %17 = arith.extf %16 : vector<16x32xbf16> to vector<16x32xf32>
      %18 = arith.addf %15, %17 : vector<16x32xf32>
      %cst_16 = arith.constant dense<0.000000e+00> : vector<16xf32>
      %19 = vector.multi_reduction <add>, %18, %cst_16 [1] : vector<16x32xf32> to vector<16xf32>
      %20 = vector.shape_cast %19 : vector<16xf32> to vector<16x1xf32>
      %cst_17 = arith.constant 3.200000e+01 : f32
      %21 = vector.broadcast %cst_17 : f32 to vector<16x1xf32>
      %22 = arith.divf %20, %21 : vector<16x1xf32>
      %23 = vector.broadcast %22 : vector<16x1xf32> to vector<16x32xf32>
      %24 = arith.subf %18, %23 : vector<16x32xf32>
      %25 = arith.mulf %24, %24 : vector<16x32xf32>
      %cst_18 = arith.constant dense<0.000000e+00> : vector<16xf32>
      %26 = vector.multi_reduction <add>, %25, %cst_18 [1] : vector<16x32xf32> to vector<16xf32>
      %27 = vector.shape_cast %26 : vector<16xf32> to vector<16x1xf32>
      %cst_19 = arith.constant 3.200000e+01 : f32
      %28 = vector.broadcast %cst_19 : f32 to vector<16x1xf32>
      %29 = arith.divf %27, %28 : vector<16x1xf32>
      %30 = vector.broadcast %22 : vector<16x1xf32> to vector<16x32xf32>
      %31 = arith.subf %18, %30 : vector<16x32xf32>
      %cst_20 = arith.constant 9.99999996E-13 : f32
      %32 = vector.broadcast %cst_20 : f32 to vector<16x1xf32>
      %33 = arith.addf %29, %32 : vector<16x1xf32>
      %34 = math.rsqrt %33 : vector<16x1xf32>
      %35 = vector.broadcast %34 : vector<16x1xf32> to vector<16x32xf32>
      %36 = arith.mulf %31, %35 : vector<16x32xf32>
      %c0_21 = arith.constant 0 : index
      %c0_22 = arith.constant 0 : index
      %37 = vector.load %arg6[%c0_21, %c0_22] : memref<1x32xf32, #tpu.memory_space<vmem>>, vector<1x32xf32>
      %38 = vector.broadcast %37 : vector<1x32xf32> to vector<16x32xf32>
      %39 = arith.mulf %36, %38 : vector<16x32xf32>
      %c0_23 = arith.constant 0 : index
      %c0_24 = arith.constant 0 : index
      %40 = vector.load %arg7[%c0_23, %c0_24] : memref<1x32xf32, #tpu.memory_space<vmem>>, vector<1x32xf32>
      %41 = vector.broadcast %40 : vector<1x32xf32> to vector<16x32xf32>
      %42 = arith.addf %39, %41 : vector<16x32xf32>
      %43 = arith.truncf %42 : vector<16x32xf32> to vector<16x32xbf16>
      %c0_25 = arith.constant 0 : index
      %c0_26 = arith.constant 0 : index
      %44 = vector.load %arg8[%c0_25, %c0_26] : memref<16x32xbf16, #tpu.memory_space<vmem>>, vector<16x32xbf16>
      tpu.vector_store %arg8[%c0_25, %c0_26], %43 {strides = array<i32>} : memref<16x32xbf16, #tpu.memory_space<vmem>>, vector<16x32xbf16>,
    } else {
    }
    return
  }
  func.func @transform_0(%arg0: i32, %arg1: i32) -> (i32, i32) {
    %c0_i32 = arith.constant 0 : i32
    return %arg0, %arg1 : i32, i32
  }
  func.func @transform_1(%arg0: i32, %arg1: i32) -> (i32, i32) {
    %c0_i32 = arith.constant 0 : i32
    %c0_i32_0 = arith.constant 0 : i32
    return %arg1, %c0_i32 : i32, i32
  }
  func.func @transform_2(%arg0: i32, %arg1: i32) -> (i32, i32) {
    %c0_i32 = arith.constant 0 : i32
    %c0_i32_0 = arith.constant 0 : i32
    %c0_i32_1 = arith.constant 0 : i32
    return %c0_i32, %c0_i32_0 : i32, i32
  }
  func.func @transform_3(%arg0: i32, %arg1: i32) -> (i32, i32) {
    %c0_i32 = arith.constant 0 : i32
    %c0_i32_0 = arith.constant 0 : i32
    return %arg0, %c0_i32 : i32, i32
  }
  func.func @transform_4(%arg0: i32, %arg1: i32) -> (i32, i32) {
    %c0_i32 = arith.constant 0 : i32
    %c0_i32_0 = arith.constant 0 : i32
    %c0_i32_1 = arith.constant 0 : i32
    return %c0_i32, %c0_i32_0 : i32, i32
  }
  func.func @transform_5(%arg0: i32, %arg1: i32) -> (i32, i32) {
    %c0_i32 = arith.constant 0 : i32
    %c0_i32_0 = arith.constant 0 : i32
    %c0_i32_1 = arith.constant 0 : i32
    return %c0_i32, %c0_i32_0 : i32, i32
  }
  func.func @transform_6(%arg0: i32, %arg1: i32) -> (i32, i32) {
    %c0_i32 = arith.constant 0 : i32
    %c0_i32_0 = arith.constant 0 : i32
    return %arg0, %c0_i32 : i32, i32
  }
}

module attributes {stable_mosaic.version = 11 : i64} {
  func.func @_ffn_kernel(%arg0: i32, %arg1: i32, %arg2: memref<16x32xbf16, #tpu.memory_space<vmem>>, %arg3: memref<32x64xbf16, #tpu.memory_space<vmem>>, %arg4: memref<1x64xf32, #tpu.memory_space<vmem>>, %arg5: memref<64x32xbf16, #tpu.memory_space<vmem>>, %arg6: memref<1x32xf32, #tpu.memory_space<vmem>>, %arg7: memref<1x32xf32, #tpu.memory_space<vmem>>, %arg8: memref<1x32xf32, #tpu.memory_space<vmem>>, %arg9: memref<16x32xbf16, #tpu.memory_space<vmem>>, %arg10: memref<16x32xf32, #tpu.memory_space<vmem>>) attributes {dimension_semantics = [#tpu.dimension_semantics<parallel>, #tpu.dimension_semantics<arbitrary>], iteration_bounds = array<i64: 1, 1>, scalar_prefetch = 0 : i64, scratch_operands = 1 : i64, tpu.core_type = #tpu.core_type<tc>, window_params = [{transform_indices = @transform_0, window_bounds = array<i64: 16, 32>}, {transform_indices = @transform_1, window_bounds = array<i64: 32, 64>}, {transform_indices = @transform_2, window_bounds = array<i64: 1, 64>}, {transform_indices = @transform_3, window_bounds = array<i64: 64, 32>}, {pipeline_mode = #tpu.pipeline_mode<synchronous>, transform_indices = @transform_4, window_bounds = array<i64: 1, 32>}, {pipeline_mode = #tpu.pipeline_mode<synchronous>, transform_indices = @transform_5, window_bounds = array<i64: 1, 32>}, {pipeline_mode = #tpu.pipeline_mode<synchronous>, transform_indices = @transform_6, window_bounds = array<i64: 1, 32>}, {transform_indices = @transform_7, window_bounds = array<i64: 16, 32>}]} {
    %c0_i32 = arith.constant 0 : i32
    %0 = arith.cmpi eq, %arg1, %c0_i32 : i32
    %1 = arith.extui %0 : i1 to i32
    %c0_i32_0 = arith.constant 0 : i32
    %2 = arith.cmpi ne, %1, %c0_i32_0 : i32
    scf.if %2 {
      %cst_19 = arith.constant 0.000000e+00 : f32
      %31 = vector.broadcast %cst_19 : f32 to vector<16x32xf32>
      %c0_20 = arith.constant 0 : index
      %c0_21 = arith.constant 0 : index
      %32 = vector.load %arg10[%c0_20, %c0_21] : memref<16x32xf32, #tpu.memory_space<vmem>>, vector<16x32xf32>
      tpu.vector_store %arg10[%c0_20, %c0_21], %31 {strides = array<i32>} : memref<16x32xf32, #tpu.memory_space<vmem>>, vector<16x32xf32>,
    } else {
    }
    %c0 = arith.constant 0 : index
    %c0_1 = arith.constant 0 : index
    %3 = vector.load %arg2[%c0, %c0_1] : memref<16x32xbf16, #tpu.memory_space<vmem>>, vector<16x32xbf16>
    %c0_2 = arith.constant 0 : index
    %c0_3 = arith.constant 0 : index
    %4 = vector.load %arg3[%c0_2, %c0_3] : memref<32x64xbf16, #tpu.memory_space<vmem>>, vector<32x64xbf16>
    %cst = arith.constant dense<0.000000e+00> : vector<16x64xf32>
    %5 = tpu.matmul %3, %4, %cst {dimension_numbers = #tpu.dot_dimension_numbers<[1], [0], [0], [1], [0, 0, 1, 1], [], []>} : vector<16x32xbf16>, vector<32x64xbf16>, vector<16x64xf32> -> vector<16x64xf32>
    %c0_4 = arith.constant 0 : index
    %c0_5 = arith.constant 0 : index
    %6 = vector.load %arg4[%c0_4, %c0_5] : memref<1x64xf32, #tpu.memory_space<vmem>>, vector<1x64xf32>
    %7 = vector.broadcast %6 : vector<1x64xf32> to vector<16x64xf32>
    %8 = arith.addf %5, %7 : vector<16x64xf32>
    %9 = arith.mulf %8, %8 : vector<16x64xf32>
    %10 = arith.mulf %8, %9 : vector<16x64xf32>
    %cst_6 = arith.constant 4.471500e-02 : f32
    %11 = vector.broadcast %cst_6 : f32 to vector<16x64xf32>
    %12 = arith.mulf %11, %10 : vector<16x64xf32>
    %13 = arith.addf %8, %12 : vector<16x64xf32>
    %cst_7 = arith.constant 0.797884583 : f32
    %14 = vector.broadcast %cst_7 : f32 to vector<16x64xf32>
    %15 = arith.mulf %14, %13 : vector<16x64xf32>
    %16 = math.tanh %15 : vector<16x64xf32>
    %cst_8 = arith.constant 1.000000e+00 : f32
    %17 = vector.broadcast %cst_8 : f32 to vector<16x64xf32>
    %18 = arith.addf %17, %16 : vector<16x64xf32>
    %cst_9 = arith.constant 5.000000e-01 : f32
    %19 = vector.broadcast %cst_9 : f32 to vector<16x64xf32>
    %20 = arith.mulf %19, %18 : vector<16x64xf32>
    %21 = arith.mulf %8, %20 : vector<16x64xf32>
    %c0_10 = arith.constant 0 : index
    %c0_11 = arith.constant 0 : index
    %22 = vector.load %arg10[%c0_10, %c0_11] : memref<16x32xf32, #tpu.memory_space<vmem>>, vector<16x32xf32>
    %23 = arith.truncf %21 : vector<16x64xf32> to vector<16x64xbf16>
    %c0_12 = arith.constant 0 : index
    %c0_13 = arith.constant 0 : index
    %24 = vector.load %arg5[%c0_12, %c0_13] : memref<64x32xbf16, #tpu.memory_space<vmem>>, vector<64x32xbf16>
    %cst_14 = arith.constant dense<0.000000e+00> : vector<16x32xf32>
    %25 = tpu.matmul %23, %24, %cst_14 {dimension_numbers = #tpu.dot_dimension_numbers<[1], [0], [0], [1], [0, 0, 1, 1], [], []>} : vector<16x64xbf16>, vector<64x32xbf16>, vector<16x32xf32> -> vector<16x32xf32>
    %26 = arith.addf %22, %25 : vector<16x32xf32>
    %c0_15 = arith.constant 0 : index
    %c0_16 = arith.constant 0 : index
    %27 = vector.load %arg10[%c0_15, %c0_16] : memref<16x32xf32, #tpu.memory_space<vmem>>, vector<16x32xf32>
    tpu.vector_store %arg10[%c0_15, %c0_16], %26 {strides = array<i32>} : memref<16x32xf32, #tpu.memory_space<vmem>>, vector<16x32xf32>,
    %c0_i32_17 = arith.constant 0 : i32
    %28 = arith.cmpi eq, %arg1, %c0_i32_17 : i32
    %29 = arith.extui %28 : i1 to i32
    %c0_i32_18 = arith.constant 0 : i32
    %30 = arith.cmpi ne, %29, %c0_i32_18 : i32
    scf.if %30 {
      %c0_19 = arith.constant 0 : index
      %c0_20 = arith.constant 0 : index
      %31 = vector.load %arg10[%c0_19, %c0_20] : memref<16x32xf32, #tpu.memory_space<vmem>>, vector<16x32xf32>
      %c0_21 = arith.constant 0 : index
      %c0_22 = arith.constant 0 : index
      %32 = vector.load %arg6[%c0_21, %c0_22] : memref<1x32xf32, #tpu.memory_space<vmem>>, vector<1x32xf32>
      %33 = vector.broadcast %32 : vector<1x32xf32> to vector<16x32xf32>
      %34 = arith.addf %31, %33 : vector<16x32xf32>
      %35 = arith.extf %3 : vector<16x32xbf16> to vector<16x32xf32>
      %36 = arith.addf %34, %35 : vector<16x32xf32>
      %cst_23 = arith.constant dense<0.000000e+00> : vector<16xf32>
      %37 = vector.multi_reduction <add>, %36, %cst_23 [1] : vector<16x32xf32> to vector<16xf32>
      %38 = vector.shape_cast %37 : vector<16xf32> to vector<16x1xf32>
      %cst_24 = arith.constant 3.200000e+01 : f32
      %39 = vector.broadcast %cst_24 : f32 to vector<16x1xf32>
      %40 = arith.divf %38, %39 : vector<16x1xf32>
      %41 = vector.broadcast %40 : vector<16x1xf32> to vector<16x32xf32>
      %42 = arith.subf %36, %41 : vector<16x32xf32>
      %43 = arith.mulf %42, %42 : vector<16x32xf32>
      %cst_25 = arith.constant dense<0.000000e+00> : vector<16xf32>
      %44 = vector.multi_reduction <add>, %43, %cst_25 [1] : vector<16x32xf32> to vector<16xf32>
      %45 = vector.shape_cast %44 : vector<16xf32> to vector<16x1xf32>
      %cst_26 = arith.constant 3.200000e+01 : f32
      %46 = vector.broadcast %cst_26 : f32 to vector<16x1xf32>
      %47 = arith.divf %45, %46 : vector<16x1xf32>
      %48 = vector.broadcast %40 : vector<16x1xf32> to vector<16x32xf32>
      %49 = arith.subf %36, %48 : vector<16x32xf32>
      %cst_27 = arith.constant 9.99999996E-13 : f32
      %50 = vector.broadcast %cst_27 : f32 to vector<16x1xf32>
      %51 = arith.addf %47, %50 : vector<16x1xf32>
      %52 = math.rsqrt %51 : vector<16x1xf32>
      %53 = vector.broadcast %52 : vector<16x1xf32> to vector<16x32xf32>
      %54 = arith.mulf %49, %53 : vector<16x32xf32>
      %c0_28 = arith.constant 0 : index
      %c0_29 = arith.constant 0 : index
      %55 = vector.load %arg7[%c0_28, %c0_29] : memref<1x32xf32, #tpu.memory_space<vmem>>, vector<1x32xf32>
      %56 = vector.broadcast %55 : vector<1x32xf32> to vector<16x32xf32>
      %57 = arith.mulf %54, %56 : vector<16x32xf32>
      %c0_30 = arith.constant 0 : index
      %c0_31 = arith.constant 0 : index
      %58 = vector.load %arg8[%c0_30, %c0_31] : memref<1x32xf32, #tpu.memory_space<vmem>>, vector<1x32xf32>
      %59 = vector.broadcast %58 : vector<1x32xf32> to vector<16x32xf32>
      %60 = arith.addf %57, %59 : vector<16x32xf32>
      %61 = arith.truncf %60 : vector<16x32xf32> to vector<16x32xbf16>
      %c0_32 = arith.constant 0 : index
      %c0_33 = arith.constant 0 : index
      %62 = vector.load %arg9[%c0_32, %c0_33] : memref<16x32xbf16, #tpu.memory_space<vmem>>, vector<16x32xbf16>
      tpu.vector_store %arg9[%c0_32, %c0_33], %61 {strides = array<i32>} : memref<16x32xbf16, #tpu.memory_space<vmem>>, vector<16x32xbf16>,
    } else {
    }
    return
  }
  func.func @transform_0(%arg0: i32, %arg1: i32) -> (i32, i32) {
    %c0_i32 = arith.constant 0 : i32
    %c0_i32_0 = arith.constant 0 : i32
    return %arg0, %c0_i32 : i32, i32
  }
  func.func @transform_1(%arg0: i32, %arg1: i32) -> (i32, i32) {
    %c0_i32 = arith.constant 0 : i32
    %c0_i32_0 = arith.constant 0 : i32
    return %c0_i32, %arg1 : i32, i32
  }
  func.func @transform_2(%arg0: i32, %arg1: i32) -> (i32, i32) {
    %c0_i32 = arith.constant 0 : i32
    %c0_i32_0 = arith.constant 0 : i32
    return %c0_i32, %arg1 : i32, i32
  }
  func.func @transform_3(%arg0: i32, %arg1: i32) -> (i32, i32) {
    %c0_i32 = arith.constant 0 : i32
    %c0_i32_0 = arith.constant 0 : i32
    return %arg1, %c0_i32 : i32, i32
  }
  func.func @transform_4(%arg0: i32, %arg1: i32) -> (i32, i32) {
    %c0_i32 = arith.constant 0 : i32
    %c0_i32_0 = arith.constant 0 : i32
    %c0_i32_1 = arith.constant 0 : i32
    return %c0_i32, %c0_i32_0 : i32, i32
  }
  func.func @transform_5(%arg0: i32, %arg1: i32) -> (i32, i32) {
    %c0_i32 = arith.constant 0 : i32
    %c0_i32_0 = arith.constant 0 : i32
    %c0_i32_1 = arith.constant 0 : i32
    return %c0_i32, %c0_i32_0 : i32, i32
  }
  func.func @transform_6(%arg0: i32, %arg1: i32) -> (i32, i32) {
    %c0_i32 = arith.constant 0 : i32
    %c0_i32_0 = arith.constant 0 : i32
    %c0_i32_1 = arith.constant 0 : i32
    return %c0_i32, %c0_i32_0 : i32, i32
  }
  func.func @transform_7(%arg0: i32, %arg1: i32) -> (i32, i32) {
    %c0_i32 = arith.constant 0 : i32
    %c0_i32_0 = arith.constant 0 : i32
    return %arg0, %c0_i32 : i32, i32
  }
}

module attributes {stable_mosaic.version = 11 : i64} {
  func.func @_pool_classify_kernel(%arg0: i32, %arg1: memref<2x8x32xbf16, #tpu.memory_space<vmem>>, %arg2: memref<2x32xf32, #tpu.memory_space<vmem>>, %arg3: memref<32x128xf32, #tpu.memory_space<vmem>>, %arg4: memref<1x128xf32, #tpu.memory_space<vmem>>, %arg5: memref<2x128xf32, #tpu.memory_space<vmem>>, %arg6: memref<2x32xf32, #tpu.memory_space<vmem>>) attributes {dimension_semantics = [#tpu.dimension_semantics<arbitrary>], iteration_bounds = array<i64: 1>, scalar_prefetch = 0 : i64, scratch_operands = 1 : i64, tpu.core_type = #tpu.core_type<tc>, window_params = [{transform_indices = @transform_0, window_bounds = array<i64: 2, 8, 32>}, {pipeline_mode = #tpu.pipeline_mode<synchronous>, transform_indices = @transform_1, window_bounds = array<i64: 2, 32>}, {pipeline_mode = #tpu.pipeline_mode<synchronous>, transform_indices = @transform_2, window_bounds = array<i64: 32, 128>}, {pipeline_mode = #tpu.pipeline_mode<synchronous>, transform_indices = @transform_3, window_bounds = array<i64: 1, 128>}, {pipeline_mode = #tpu.pipeline_mode<synchronous>, transform_indices = @transform_4, window_bounds = array<i64: 2, 128>}]} {
    %c0_i32 = arith.constant 0 : i32
    %0 = arith.cmpi eq, %arg0, %c0_i32 : i32
    %1 = arith.extui %0 : i1 to i32
    %c0_i32_0 = arith.constant 0 : i32
    %2 = arith.cmpi ne, %1, %c0_i32_0 : i32
    scf.if %2 {
      %cst_9 = arith.constant 0.000000e+00 : f32
      %12 = vector.broadcast %cst_9 : f32 to vector<2x32xf32>
      %c0_10 = arith.constant 0 : index
      %c0_11 = arith.constant 0 : index
      %13 = vector.load %arg6[%c0_10, %c0_11] : memref<2x32xf32, #tpu.memory_space<vmem>>, vector<2x32xf32>
      tpu.vector_store %arg6[%c0_10, %c0_11], %12 {strides = array<i32>} : memref<2x32xf32, #tpu.memory_space<vmem>>, vector<2x32xf32>,
    } else {
    }
    %c0 = arith.constant 0 : index
    %c0_1 = arith.constant 0 : index
    %3 = vector.load %arg6[%c0, %c0_1] : memref<2x32xf32, #tpu.memory_space<vmem>>, vector<2x32xf32>
    %c0_2 = arith.constant 0 : index
    %c0_3 = arith.constant 0 : index
    %c0_4 = arith.constant 0 : index
    %4 = vector.load %arg1[%c0_2, %c0_3, %c0_4] : memref<2x8x32xbf16, #tpu.memory_space<vmem>>, vector<2x8x32xbf16>
    %5 = arith.extf %4 : vector<2x8x32xbf16> to vector<2x8x32xf32>
    %cst = arith.constant dense<0.000000e+00> : vector<2x32xf32>
    %6 = vector.multi_reduction <add>, %5, %cst [1] : vector<2x8x32xf32> to vector<2x32xf32>
    %7 = arith.addf %3, %6 : vector<2x32xf32>
    %c0_5 = arith.constant 0 : index
    %c0_6 = arith.constant 0 : index
    %8 = vector.load %arg6[%c0_5, %c0_6] : memref<2x32xf32, #tpu.memory_space<vmem>>, vector<2x32xf32>
    tpu.vector_store %arg6[%c0_5, %c0_6], %7 {strides = array<i32>} : memref<2x32xf32, #tpu.memory_space<vmem>>, vector<2x32xf32>,
    %c0_i32_7 = arith.constant 0 : i32
    %9 = arith.cmpi eq, %arg0, %c0_i32_7 : i32
    %10 = arith.extui %9 : i1 to i32
    %c0_i32_8 = arith.constant 0 : i32
    %11 = arith.cmpi ne, %10, %c0_i32_8 : i32
    scf.if %11 {
      %c0_9 = arith.constant 0 : index
      %c0_10 = arith.constant 0 : index
      %12 = vector.load %arg6[%c0_9, %c0_10] : memref<2x32xf32, #tpu.memory_space<vmem>>, vector<2x32xf32>
      %cst_11 = arith.constant 1.250000e-01 : f32
      %13 = vector.broadcast %cst_11 : f32 to vector<2x32xf32>
      %14 = arith.mulf %12, %13 : vector<2x32xf32>
      %c0_12 = arith.constant 0 : index
      %c0_13 = arith.constant 0 : index
      %15 = vector.load %arg2[%c0_12, %c0_13] : memref<2x32xf32, #tpu.memory_space<vmem>>, vector<2x32xf32>
      %16 = arith.addf %14, %15 : vector<2x32xf32>
      %c0_14 = arith.constant 0 : index
      %c0_15 = arith.constant 0 : index
      %17 = vector.load %arg3[%c0_14, %c0_15] : memref<32x128xf32, #tpu.memory_space<vmem>>, vector<32x128xf32>
      %cst_16 = arith.constant dense<0.000000e+00> : vector<2x128xf32>
      %18 = tpu.matmul %16, %17, %cst_16 {dimension_numbers = #tpu.dot_dimension_numbers<[1], [0], [0], [1], [0, 0, 1, 1], [], []>} : vector<2x32xf32>, vector<32x128xf32>, vector<2x128xf32> -> vector<2x128xf32>
      %c0_17 = arith.constant 0 : index
      %c0_18 = arith.constant 0 : index
      %19 = vector.load %arg4[%c0_17, %c0_18] : memref<1x128xf32, #tpu.memory_space<vmem>>, vector<1x128xf32>
      %20 = vector.broadcast %19 : vector<1x128xf32> to vector<2x128xf32>
      %21 = arith.addf %18, %20 : vector<2x128xf32>
      %c0_19 = arith.constant 0 : index
      %c0_20 = arith.constant 0 : index
      %22 = vector.load %arg5[%c0_19, %c0_20] : memref<2x128xf32, #tpu.memory_space<vmem>>, vector<2x128xf32>
      tpu.vector_store %arg5[%c0_19, %c0_20], %21 {strides = array<i32>} : memref<2x128xf32, #tpu.memory_space<vmem>>, vector<2x128xf32>,
    } else {
    }
    return
  }
  func.func @transform_0(%arg0: i32) -> (i32, i32, i32) {
    %c0_i32 = arith.constant 0 : i32
    %c0_i32_0 = arith.constant 0 : i32
    %c0_i32_1 = arith.constant 0 : i32
    return %c0_i32, %arg0, %c0_i32_0 : i32, i32, i32
  }
  func.func @transform_1(%arg0: i32) -> (i32, i32) {
    %c0_i32 = arith.constant 0 : i32
    %c0_i32_0 = arith.constant 0 : i32
    %c0_i32_1 = arith.constant 0 : i32
    return %c0_i32, %c0_i32_0 : i32, i32
  }
  func.func @transform_2(%arg0: i32) -> (i32, i32) {
    %c0_i32 = arith.constant 0 : i32
    %c0_i32_0 = arith.constant 0 : i32
    %c0_i32_1 = arith.constant 0 : i32
    return %c0_i32, %c0_i32_0 : i32, i32
  }
  func.func @transform_3(%arg0: i32) -> (i32, i32) {
    %c0_i32 = arith.constant 0 : i32
    %c0_i32_0 = arith.constant 0 : i32
    %c0_i32_1 = arith.constant 0 : i32
    return %c0_i32, %c0_i32_0 : i32, i32
  }
  func.func @transform_4(%arg0: i32) -> (i32, i32) {
    %c0_i32 = arith.constant 0 : i32
    %c0_i32_0 = arith.constant 0 : i32
    %c0_i32_1 = arith.constant 0 : i32
    return %c0_i32, %c0_i32_0 : i32, i32
  }
}

</mosaic_0001>

<llo_original>
// kernel: role_aware_transformer_forward.13
$region0: #{role_aware_transformer_forward.13}
  #allocation0 [shape = 'u32[]', space=smem, size = 0x4, offset = 0x4, fixed_abs, tag = 'smem constant byte address 0x4 - core index']
  #allocation1 [shape = 'u32[72,128]{1,0:T(1,128)}', space=vmem, size = 0x9000, scoped, tag = 'internal scratch']
  #allocation2 [shape = 'f32[16,32]{1,0:T(8,128)}', space=vmem, size = 0x2000, scoped, tag = 'scratch operand']
  %s0 = inlined_call_operand.vmem [shape: bf16[16,32], index: 0, kind: input, shape index: {}]
  %s1 = inlined_call_operand.vmem [shape: bf16[32,32], index: 1, kind: input, shape index: {}]
  %s2 = inlined_call_operand.vmem [shape: f32[1,32], index: 2, kind: input, shape index: {}]
  %s3 = inlined_call_operand.vmem [shape: bf16[16,32], index: 3, kind: input, shape index: {}]
  %s4 = inlined_call_operand.vmem [shape: f32[1,32], index: 4, kind: input, shape index: {}]
  %s5 = inlined_call_operand.vmem [shape: f32[1,32], index: 5, kind: input, shape index: {}]
  %s6 = inlined_call_operand.vmem [shape: bf16[16,32], index: 6, kind: output, shape index: {}]
  %s7 = sld [smem:[#allocation0]]
  $region42: #{role_aware_transformer_forward.13} parent=0
    _
  %s9 = ssub.s32 1, %s7
  %s10 = scalar_select 0, %s9, %s7
  // Predicated region
  $region2: #{role_aware_transformer_forward.13} parent=0 // pred_check
    _
  $region3: #{role_aware_transformer_forward.13} parent=0 // pred_check_branch
    %12 = sbr.rel (0) target = $region5
  $region4: #{role_aware_transformer_forward.13} parent=0 // pred_region
    _
  $region5: #{role_aware_transformer_forward.13} parent=0 // pred_fallthru
    _
  // Predicated region
  $region6: #{role_aware_transformer_forward.13} parent=0 // pred_check
    _
  $region7: #{role_aware_transformer_forward.13} parent=0 // pred_check_branch
    %14 = sbr.rel (0) target = $region9
  $region8: #{role_aware_transformer_forward.13} parent=0 // pred_region
    _
  $region9: #{role_aware_transformer_forward.13} parent=0 // pred_fallthru
    _
  // Predicated region
  $region10: #{role_aware_transformer_forward.13} parent=0 // pred_check
    _
  $region11: #{role_aware_transformer_forward.13} parent=0 // pred_check_branch
    %16 = sbr.rel (0) target = $region13
  $region12: #{role_aware_transformer_forward.13} parent=0 // pred_region
    _
  $region13: #{role_aware_transformer_forward.13} parent=0 // pred_fallthru
    _
  // Predicated region
  $region14: #{role_aware_transformer_forward.13} parent=0 // pred_check
    _
  $region15: #{role_aware_transformer_forward.13} parent=0 // pred_check_branch
    %18 = sbr.rel (0) target = $region17
  $region16: #{role_aware_transformer_forward.13} parent=0 // pred_region
    _
  $region17: #{role_aware_transformer_forward.13} parent=0 // pred_fallthru
    _
  // Predicated region
  $region18: #{role_aware_transformer_forward.13} parent=0 // pred_check
    _
  $region19: #{role_aware_transformer_forward.13} parent=0 // pred_check_branch
    %20 = sbr.rel (0) target = $region21
  $region20: #{role_aware_transformer_forward.13} parent=0 // pred_region
    _
  $region21: #{role_aware_transformer_forward.13} parent=0 // pred_fallthru
    _
  // Predicated region
  $region22: #{role_aware_transformer_forward.13} parent=0 // pred_check
    _
  $region23: #{role_aware_transformer_forward.13} parent=0 // pred_check_branch
    %22 = sbr.rel (0) target = $region25
  $region24: #{role_aware_transformer_forward.13} parent=0 // pred_region
    _
  $region25: #{role_aware_transformer_forward.13} parent=0 // pred_fallthru
    _
  %p24 = scmp.eq.s32.totalorder 0, 0
  // Predicated region
  $region26: #{role_aware_transformer_forward.13} parent=0 // pred_check
    %p25 = pneg %p24
  $region27: #{role_aware_transformer_forward.13} parent=0 // pred_check_branch
    %27 = sbr.rel (%p25) target = $region29
  $region28: #{role_aware_transformer_forward.13} parent=0 // pred_region
    %vm28 = vcmask 261120
    %29 = vst.msk [vmem:[#allocation2] sm:$0xff] %vm28, 0.0
    %30 = vst.msk [vmem:[#allocation2 + $0x8] sm:$0xff] %vm28, 0.0
  $region29: #{role_aware_transformer_forward.13} parent=0 // pred_fallthru
    _
  %v31 = vld [vmem:[#allocation2] sm:$0xff]
  %v32 = vld [vmem:[#allocation2 + $0x8] sm:$0xff]
  %v33 = vld [vmem:[%s0] sm:$0xf]
  %v34 = vld [vmem:[%s0 + $0x4] sm:$0xf]
  %v35 = vld [vmem:[%s1] sm:$0xf]
  %v36 = vld [vmem:[%s1 + $0x4] sm:$0xf]
  %v37 = vld [vmem:[%s1 + $0x8] sm:$0xf]
  %v38 = vld [vmem:[%s1 + $0xc] sm:$0xf]
  %v41 = vunpack.c.l.b16 %v33
  %v42 = vunpack.c.l.b16 %v34
  %v43 = vpack.c.b16 %v42, %v41
  %v48 = vunpack.c.l.b16 %v35
  %v49 = vunpack.c.l.b16 %v36
  %v50 = vunpack.c.l.b16 %v37
  %v51 = vunpack.c.l.b16 %v38
  %v52 = vpack.c.b16 %v49, %v48
  %v53 = vpack.c.b16 %v51, %v50
  %vm56 = vcmask 261120
  %v58 = vsel %vm56, %v43, 0
  %60 = vmatpush.bf16.msra.mxu0 0
  %61 = vmatpush.bf16.msra.mxu0 0
  %62 = vmatpush.bf16.msra.mxu0 0
  %63 = vmatpush.bf16.msra.mxu0 0
  %64 = vmatpush.bf16.msra.mxu0 0
  %65 = vmatpush.bf16.msra.mxu0 0
  %66 = vmatpush.bf16.msra.mxu0 %v53
  %67 = vmatpush.bf16.msra.mxu0 %v52
  %68 = vmatmul.bf16.gmra.mxu0 %v58
  %v69 = vpop.f32.mrf.mxu0
  %v70 = vadd.f32 0.0, %v69
  %v71 = vpop.f32.mrf.mxu0
  %v72 = vadd.f32 0.0, %v71
  %73 = vdwg.mxu0
  %v74 = vadd.f32 %v31, %v70
  %v75 = vadd.f32 %v32, %v72
  %76 = vst.msk [vmem:[#allocation2] sm:$0xff] %vm56, %v74
  %77 = vst.msk [vmem:[#allocation2 + $0x8] sm:$0xff] %vm56, %v75
  // Predicated region
  $region30: #{role_aware_transformer_forward.13} parent=0 // pred_check
    %p78 = pneg %p24
  $region31: #{role_aware_transformer_forward.13} parent=0 // pred_check_branch
    %80 = sbr.rel (%p78) target = $region33
  $region32: #{role_aware_transformer_forward.13} parent=0 // pred_region
    %v81 = vld [vmem:[#allocation2] sm:$0xff]
    %v82 = vld [vmem:[#allocation2 + $0x8] sm:$0xff]
    %v83 = vld [vmem:[%s2] sm:$0x1]
    %v85 = vperm.slane %v83, 0
    %v87 = vadd.f32 %v81, %v85
    %v88 = vadd.f32 %v82, %v85
    %v89 = vld [vmem:[%s3] sm:$0xf]
    %v90 = vld [vmem:[%s3 + $0x4] sm:$0xf]
    %v91 = vunpack.c.l.bf16 %v89
    %v92 = vunpack.c.l.bf16 %v90
    %v93 = vadd.f32 %v87, %v91
    %v94 = vadd.f32 %v88, %v92
    %v95 = vsel %vm56, %v93, 0.0
    %96 = vadd.xlane.f32.xlu0 %v95
    %v97 = vpop.xlane.xlu0 %96
    %v98 = vsel %vm56, %v94, 0.0
    %99 = vadd.xlane.f32.xlu0 %v98
    %v100 = vpop.xlane.xlu0 %99
    %v101 = vrcp.pop 32.0
    %v102 = vmul.f32 32.0, %v101
    %v103 = vsub.f32 1.0, %v102
    %v104 = vmul.f32 %v101, %v103
    %v105 = vadd.f32 %v101, %v104
    %vm106 = vweird.f32 %v101
    %v107 = vsel %vm106, %v101, %v105
    %v108 = vmul.f32 %v97, %v107
    %v109 = vmul.f32 %v100, %v107
    %v110 = vsub.f32 %v93, %v108
    %v111 = vsub.f32 %v94, %v109
    %v112 = vmul.f32 %v110, %v110
    %v113 = vmul.f32 %v111, %v111
    %v114 = vsel %vm56, %v112, 0.0
    %115 = vadd.xlane.f32.xlu0 %v114
    %v116 = vpop.xlane.xlu0 %115
    %v117 = vsel %vm56, %v113, 0.0
    %118 = vadd.xlane.f32.xlu0 %v117
    %v119 = vpop.xlane.xlu0 %118
    %v120 = vmul.f32 %v116, %v107
    %v121 = vmul.f32 %v119, %v107
    %v122 = vadd.f32 %v120, 1e-12
    %v123 = vadd.f32 %v121, 1e-12
    %v124 = vrsqrt.pop %v122
    %v125 = vmul.f32 %v124, %v122
    %v126 = vmul.f32 %v125, %v124
    %v127 = vmul.f32 0.5, %v126
    %v128 = vsub.f32 1.5, %v127
    %v129 = vmul.f32 %v124, %v128
    %vm130 = vweird.f32 %v122
    %vm131 = vweird.f32 %v124
    %vm132 = vmor %vm130, %vm131
    %v133 = vsel %vm132, %v124, %v129
    %v134 = vrsqrt.pop %v123
    %v135 = vmul.f32 %v134, %v123
    %v136 = vmul.f32 %v135, %v134
    %v137 = vmul.f32 0.5, %v136
    %v138 = vsub.f32 1.5, %v137
    %v139 = vmul.f32 %v134, %v138
    %vm140 = vweird.f32 %v123
    %vm141 = vweird.f32 %v134
    %vm142 = vmor %vm140, %vm141
    %v143 = vsel %vm142, %v134, %v139
    %v144 = vmul.f32 %v110, %v133
    %v145 = vmul.f32 %v111, %v143
    %v146 = vld [vmem:[%s4] sm:$0x1]
    %v148 = vperm.slane %v146, 0
    %v150 = vmul.f32 %v144, %v148
    %v151 = vmul.f32 %v145, %v148
    %v152 = vld [vmem:[%s5] sm:$0x1]
    %v154 = vperm.slane %v152, 0
    %v156 = vadd.f32 %v150, %v154
    %v157 = vadd.f32 %v151, %v154
    %v158 = vpack.c.bf16 %v156, %v156
    %v159 = vpack.c.bf16 %v157, %v157
    %vm160 = vcmask 257024
    %161 = vst.msk [vmem:[%s6] sm:$0xf] %vm160, %v158
    %162 = vst.msk [vmem:[%s6 + $0x4] sm:$0xf] %vm160, %v159
  $region33: #{role_aware_transformer_forward.13} parent=0 // pred_fallthru
    _
  // Predicated region
  $region34: #{role_aware_transformer_forward.13} parent=0 // pred_check
    _
  $region35: #{role_aware_transformer_forward.13} parent=0 // pred_check_branch
    %164 = sbr.rel (0) target = $region37
  $region36: #{role_aware_transformer_forward.13} parent=0 // pred_region
    _
  $region37: #{role_aware_transformer_forward.13} parent=0 // pred_fallthru
    _
  // Predicated region
  $region38: #{role_aware_transformer_forward.13} parent=0 // pred_check
    _
  $region39: #{role_aware_transformer_forward.13} parent=0 // pred_check_branch
    %166 = sbr.rel (0) target = $region41
  $region40: #{role_aware_transformer_forward.13} parent=0 // pred_region
    _
  $region41: #{role_aware_transformer_forward.13} parent=0 // pred_fallthru
    _

// kernel: role_aware_transformer_forward.10
$region0: #{role_aware_transformer_forward.10}
  #allocation0 [shape = 'u32[]', space=smem, size = 0x4, offset = 0x4, fixed_abs, tag = 'smem constant byte address 0x4 - core index']
  #allocation1 [shape = 'u32[72,128]{1,0:T(1,128)}', space=vmem, size = 0x9000, scoped, tag = 'internal scratch']
  %s0 = inlined_call_operand.vmem [shape: f32[16,32], index: 0, kind: input, shape index: {}]
  %s1 = inlined_call_operand.vmem [shape: f32[1,32], index: 1, kind: input, shape index: {}]
  %s2 = inlined_call_operand.vmem [shape: f32[1,32], index: 2, kind: input, shape index: {}]
  %s3 = inlined_call_operand.vmem [shape: bf16[16,32], index: 3, kind: output, shape index: {}]
  %s4 = sld [smem:[#allocation0]]
  $region22: #{role_aware_transformer_forward.10} parent=0
    _
  %s6 = ssub.s32 1, %s4
  %s7 = scalar_select 0, %s6, %s4
  // Predicated region
  $region2: #{role_aware_transformer_forward.10} parent=0 // pred_check
    _
  $region3: #{role_aware_transformer_forward.10} parent=0 // pred_check_branch
    %9 = sbr.rel (0) target = $region5
  $region4: #{role_aware_transformer_forward.10} parent=0 // pred_region
    _
  $region5: #{role_aware_transformer_forward.10} parent=0 // pred_fallthru
    _
  // Predicated region
  $region6: #{role_aware_transformer_forward.10} parent=0 // pred_check
    _
  $region7: #{role_aware_transformer_forward.10} parent=0 // pred_check_branch
    %11 = sbr.rel (0) target = $region9
  $region8: #{role_aware_transformer_forward.10} parent=0 // pred_region
    _
  $region9: #{role_aware_transformer_forward.10} parent=0 // pred_fallthru
    _
  // Predicated region
  $region10: #{role_aware_transformer_forward.10} parent=0 // pred_check
    _
  $region11: #{role_aware_transformer_forward.10} parent=0 // pred_check_branch
    %13 = sbr.rel (0) target = $region13
  $region12: #{role_aware_transformer_forward.10} parent=0 // pred_region
    _
  $region13: #{role_aware_transformer_forward.10} parent=0 // pred_fallthru
    _
  %v14 = vld [vmem:[%s0] sm:$0xff]
  %v15 = vld [vmem:[%s0 + $0x8] sm:$0xff]
  %vm16 = vcmask 261120
  %v17 = vsel %vm16, %v14, 0.0
  %18 = vadd.xlane.f32.xlu0 %v17
  %v19 = vpop.xlane.xlu0 %18
  %v20 = vsel %vm16, %v15, 0.0
  %21 = vadd.xlane.f32.xlu0 %v20
  %v22 = vpop.xlane.xlu0 %21
  %v23 = vrcp.pop 32.0
  %v24 = vmul.f32 32.0, %v23
  %v25 = vsub.f32 1.0, %v24
  %v26 = vmul.f32 %v23, %v25
  %v27 = vadd.f32 %v23, %v26
  %vm28 = vweird.f32 %v23
  %v29 = vsel %vm28, %v23, %v27
  %v30 = vmul.f32 %v19, %v29
  %v31 = vmul.f32 %v22, %v29
  %v32 = vsub.f32 %v14, %v30
  %v33 = vsub.f32 %v15, %v31
  %v34 = vmul.f32 %v32, %v32
  %v35 = vmul.f32 %v33, %v33
  %v36 = vsel %vm16, %v34, 0.0
  %37 = vadd.xlane.f32.xlu0 %v36
  %v38 = vpop.xlane.xlu0 %37
  %v39 = vsel %vm16, %v35, 0.0
  %40 = vadd.xlane.f32.xlu0 %v39
  %v41 = vpop.xlane.xlu0 %40
  %v42 = vmul.f32 %v38, %v29
  %v43 = vmul.f32 %v41, %v29
  %v44 = vadd.f32 %v42, 1e-12
  %v45 = vadd.f32 %v43, 1e-12
  %v46 = vrsqrt.pop %v44
  %v47 = vmul.f32 %v46, %v44
  %v48 = vmul.f32 %v47, %v46
  %v49 = vmul.f32 0.5, %v48
  %v50 = vsub.f32 1.5, %v49
  %v51 = vmul.f32 %v46, %v50
  %vm52 = vweird.f32 %v44
  %vm53 = vweird.f32 %v46
  %vm54 = vmor %vm52, %vm53
  %v55 = vsel %vm54, %v46, %v51
  %v56 = vrsqrt.pop %v45
  %v57 = vmul.f32 %v56, %v45
  %v58 = vmul.f32 %v57, %v56
  %v59 = vmul.f32 0.5, %v58
  %v60 = vsub.f32 1.5, %v59
  %v61 = vmul.f32 %v56, %v60
  %vm62 = vweird.f32 %v45
  %vm63 = vweird.f32 %v56
  %vm64 = vmor %vm62, %vm63
  %v65 = vsel %vm64, %v56, %v61
  %v66 = vmul.f32 %v32, %v55
  %v67 = vmul.f32 %v33, %v65
  %v68 = vld [vmem:[%s1] sm:$0x1]
  %v70 = vperm.slane %v68, 0
  %v72 = vmul.f32 %v66, %v70
  %v73 = vmul.f32 %v67, %v70
  %v74 = vld [vmem:[%s2] sm:$0x1]
  %v76 = vperm.slane %v74, 0
  %v78 = vadd.f32 %v72, %v76
  %v79 = vadd.f32 %v73, %v76
  %v80 = vpack.c.bf16 %v78, %v78
  %v81 = vpack.c.bf16 %v79, %v79
  %vm82 = vcmask 257024
  %83 = vst.msk [vmem:[%s3] sm:$0xf] %vm82, %v80
  %84 = vst.msk [vmem:[%s3 + $0x4] sm:$0xf] %vm82, %v81
  // Predicated region
  $region14: #{role_aware_transformer_forward.10} parent=0 // pred_check
    _
  $region15: #{role_aware_transformer_forward.10} parent=0 // pred_check_branch
    %86 = sbr.rel (0) target = $region17
  $region16: #{role_aware_transformer_forward.10} parent=0 // pred_region
    _
  $region17: #{role_aware_transformer_forward.10} parent=0 // pred_fallthru
    _
  // Predicated region
  $region18: #{role_aware_transformer_forward.10} parent=0 // pred_check
    _
  $region19: #{role_aware_transformer_forward.10} parent=0 // pred_check_branch
    %88 = sbr.rel (0) target = $region21
  $region20: #{role_aware_transformer_forward.10} parent=0 // pred_region
    _
  $region21: #{role_aware_transformer_forward.10} parent=0 // pred_fallthru
    _

// kernel: role_aware_transformer_forward.11
$region0: #{role_aware_transformer_forward.11}
  #allocation0 [shape = 'u32[]', space=smem, size = 0x4, offset = 0x4, fixed_abs, tag = 'smem constant byte address 0x4 - core index']
  #allocation1 [shape = 'u32[72,128]{1,0:T(1,128)}', space=vmem, size = 0x9000, scoped, tag = 'internal scratch']
  #allocation2 [shape = 'f32[16,32]{1,0:T(8,128)}', space=vmem, size = 0x2000, scoped, tag = 'scratch operand']
  %s0 = inlined_call_operand.vmem [shape: bf16[16,32], index: 0, kind: input, shape index: {}]
  %s1 = inlined_call_operand.vmem [shape: bf16[3,32,32], index: 1, kind: input, shape index: {}]
  %s2 = inlined_call_operand.vmem [shape: f32[3,1,32], index: 2, kind: input, shape index: {}]
  %s3 = inlined_call_operand.vmem [shape: bf16[3,16,32], index: 3, kind: output, shape index: {}]
  %s4 = sld [smem:[#allocation0]]
  $region53: #{role_aware_transformer_forward.11} parent=0
    _
  %s6 = ssub.s32 1, %s4
  %s7 = scalar_select 0, %s6, %s4
  loop: start=0, step=1, limit=5
  $region2: #{role_aware_transformer_forward.11} parent=0 // loop_pre_header
    _
  $region3: #{role_aware_transformer_forward.11} parent=0 // loop_header
    %s9 = sphi 0, %s13
    %p10 = scmp.ge.s32.totalorder %s9, 5
    %s16 = sphi 0, %s42
    %s17 = sphi 0, %s38
    %s18 = sphi 0, %s34
    %s19 = sphi 0, %s30
    %s20 = sphi 0, %s16
    %s21 = sphi 0, %s17
    %s22 = sphi 0, %s18
    %s23 = sphi 0, %s19
    %s24 = sphi 0, %s20
    %s25 = sphi 0, %s21
    %s26 = sphi 0, %s22
    %s27 = sphi 0, %s23
    %s47 = sphi 0, %s49
    %s50 = sphi 0, %s47
    %s51 = sphi 0, %s50
    %s67 = sphi 0, %s51
    %s77 = sphi 0, %s79
    %s80 = sphi 0, %s77
    %s81 = sphi 0, %s80
    %s97 = sphi 0, %s81
    %s105 = sphi 0, %s107
    %s108 = sphi 0, %s105
    %s109 = sphi 0, %s108
    %s125 = sphi 0, %s109
    %s135 = sphi 0, %s137
    %s138 = sphi 0, %s135
    %s139 = sphi 0, %s138
    %s155 = sphi 0, %s139
  $region4: #{role_aware_transformer_forward.11} parent=0 // loop_header_branch
    %12 = sbr.rel (%p10) target = $region8
  $region5: #{role_aware_transformer_forward.11} parent=0 // loop_body
    %s14 = ssub.s32 %s9, 1
    %s15 = ssub.s32 %s9, 2
    %s28 = sadd.s32 1, %s19
    %p29 = scmp.ge.s32.totalorder %s28, 1
    %s30 = scalar_select %p29, 0, %s28
    %s31 = sadd.s32 1, %s18
    %s32 = scalar_select %p29, %s31, %s18
    %p33 = scmp.ge.s32.totalorder %s32, 1
    %s34 = scalar_select %p33, 0, %s32
    %s35 = sadd.s32 1, %s17
    %s36 = scalar_select %p33, %s35, %s17
    %p37 = scmp.ge.s32.totalorder %s36, 1
    %s38 = scalar_select %p37, 0, %s36
    %s39 = sadd.s32 1, %s16
    %s40 = scalar_select %p37, %s39, %s16
    %p41 = scmp.ge.s32.totalorder %s40, 3
    %s42 = scalar_select %p41, 0, %s40
    %s43 = ssub.s32 %s17, %s38
    %s44 = ssub.s32 %s19, %s30
    %s45 = sor.u32 %s43, %s44
    %p46 = scmp.eq.s32.totalorder %s45, 0
    %s48 = sadd.s32 %s47, 1
    %s49 = scalar_select %p46, %s47, %s48
    %p52 = pneg %p46
    %p53 = scmp.eq.s32.totalorder %s9, 2
    %p54 = por %p52, %p53
    %p55 = scmp.ne.s32.totalorder %s47, %s50
    %p56 = scmp.eq.s32.totalorder %s9, 0
    %p57 = por %p55, %p56
    %p58 = scmp.ne.s32.totalorder %s47, %s50
    %p59 = scmp.eq.s32.totalorder %s14, 2
    %p60 = por %p58, %p59
    %p61 = scmp.ne.s32.totalorder %s50, %s51
    %p62 = scmp.eq.s32.totalorder %s14, 0
    %p63 = por %p61, %p62
    %p64 = scmp.ne.s32.totalorder %s50, %s51
    %p65 = scmp.eq.s32.totalorder %s15, 2
    %p66 = por %p64, %p65
    %p68 = scmp.ne.s32.totalorder %s51, %s67
    %p69 = scmp.eq.s32.totalorder %s15, 0
    %p70 = por %p68, %p69
    %s71 = ssub.s32 %s16, %s42
    %s72 = ssub.s32 %s19, %s30
    %s73 = sor.u32 %s71, %s72
    %s74 = ssub.s32 %s18, %s34
    %s75 = sor.u32 %s73, %s74
    %p76 = scmp.eq.s32.totalorder %s75, 0
    %s78 = sadd.s32 %s77, 1
    %s79 = scalar_select %p76, %s77, %s78
    %p82 = pneg %p76
    %p83 = scmp.eq.s32.totalorder %s9, 2
    %p84 = por %p82, %p83
    %p85 = scmp.ne.s32.totalorder %s77, %s80
    %p86 = scmp.eq.s32.totalorder %s9, 0
    %p87 = por %p85, %p86
    %p88 = scmp.ne.s32.totalorder %s77, %s80
    %p89 = scmp.eq.s32.totalorder %s14, 2
    %p90 = por %p88, %p89
    %p91 = scmp.ne.s32.totalorder %s80, %s81
    %p92 = scmp.eq.s32.totalorder %s14, 0
    %p93 = por %p91, %p92
    %p94 = scmp.ne.s32.totalorder %s80, %s81
    %p95 = scmp.eq.s32.totalorder %s15, 2
    %p96 = por %p94, %p95
    %p98 = scmp.ne.s32.totalorder %s81, %s97
    %p99 = scmp.eq.s32.totalorder %s15, 0
    %p100 = por %p98, %p99
    %s101 = ssub.s32 %s16, %s42
    %s102 = ssub.s32 %s18, %s34
    %s103 = sor.u32 %s101, %s102
    %p104 = scmp.eq.s32.totalorder %s103, 0
    %s106 = sadd.s32 %s105, 1
    %s107 = scalar_select %p104, %s105, %s106
    %p110 = pneg %p104
    %p111 = scmp.eq.s32.totalorder %s9, 2
    %p112 = por %p110, %p111
    %p113 = scmp.ne.s32.totalorder %s105, %s108
    %p114 = scmp.eq.s32.totalorder %s9, 0
    %p115 = por %p113, %p114
    %p116 = scmp.ne.s32.totalorder %s105, %s108
    %p117 = scmp.eq.s32.totalorder %s14, 2
    %p118 = por %p116, %p117
    %p119 = scmp.ne.s32.totalorder %s108, %s109
    %p120 = scmp.eq.s32.totalorder %s14, 0
    %p121 = por %p119, %p120
    %p122 = scmp.ne.s32.totalorder %s108, %s109
    %p123 = scmp.eq.s32.totalorder %s15, 2
    %p124 = por %p122, %p123
    %p126 = scmp.ne.s32.totalorder %s109, %s125
    %p127 = scmp.eq.s32.totalorder %s15, 0
    %p128 = por %p126, %p127
    %s129 = ssub.s32 %s16, %s42
    %s130 = ssub.s32 %s17, %s38
    %s131 = sor.u32 %s129, %s130
    %s132 = ssub.s32 %s18, %s34
    %s133 = sor.u32 %s131, %s132
    %p134 = scmp.eq.s32.totalorder %s133, 0
    %s136 = sadd.s32 %s135, 1
    %s137 = scalar_select %p134, %s135, %s136
    %p140 = pneg %p134
    %p141 = scmp.eq.s32.totalorder %s9, 2
    %p142 = por %p140, %p141
    %p143 = scmp.ne.s32.totalorder %s135, %s138
    %p144 = scmp.eq.s32.totalorder %s9, 0
    %p145 = por %p143, %p144
    %p146 = scmp.ne.s32.totalorder %s135, %s138
    %p147 = scmp.eq.s32.totalorder %s14, 2
    %p148 = por %p146, %p147
    %p149 = scmp.ne.s32.totalorder %s138, %s139
    %p150 = scmp.eq.s32.totalorder %s14, 0
    %p151 = por %p149, %p150
    %p152 = scmp.ne.s32.totalorder %s138, %s139
    %p153 = scmp.eq.s32.totalorder %s15, 2
    %p154 = por %p152, %p153
    %p156 = scmp.ne.s32.totalorder %s139, %s155
    %p157 = scmp.eq.s32.totalorder %s15, 0
    %p158 = por %p156, %p157
    %p159 = scmp.le.s32.totalorder 1, %s9
    %p160 = scmp.lt.s32.totalorder %s9, 4
    %p161 = pnand %p159, %p160
    %p162 = pneg %p161
    // Predicated region
    $region9: #{role_aware_transformer_forward.11} parent=5 // pred_check
      _
    $region10: #{role_aware_transformer_forward.11} parent=5 // pred_check_branch
      %164 = sbr.rel (%p161) target = $region12
    $region11: #{role_aware_transformer_forward.11} parent=5 // pred_region
      %s165 = ssub.s32 %s9, 1
      // Predicated region
      $region13: #{role_aware_transformer_forward.11} parent=11 // pred_check
        %p166 = pneg %p63
      $region14: #{role_aware_transformer_forward.11} parent=11 // pred_check_branch
        %168 = sbr.rel (%p166) target = $region16
      $region15: #{role_aware_transformer_forward.11} parent=11 // pred_region
        %s169 = smul.u32 2, %s21
        %p170 = scmp.lt.s32.totalorder %s169, 1
        %s171 = scalar_select %p170, %s169, 1
        %p172 = scmp.lt.s32.totalorder %s23, 0
        %s173 = scalar_select %p172, %s23, 0
        %s174 = sadd.s32 %s173, %s171
        %s175 = smul.addr %s174, 4
        %s176 = scalar_lea.vmem %s0, %s175
        %s177 = smul.u32 2, %s21
      $region16: #{role_aware_transformer_forward.11} parent=11 // pred_fallthru
        _
    $region12: #{role_aware_transformer_forward.11} parent=5 // pred_fallthru
      _
    %p178 = scmp.lt.s32.totalorder %s9, 3
    // Predicated region
    $region17: #{role_aware_transformer_forward.11} parent=5 // pred_check
      %p179 = pneg %p178
    $region18: #{role_aware_transformer_forward.11} parent=5 // pred_check_branch
      %181 = sbr.rel (%p179) target = $region20
    $region19: #{role_aware_transformer_forward.11} parent=5 // pred_region
      // Predicated region
      $region21: #{role_aware_transformer_forward.11} parent=19 // pred_check
        %p182 = pneg %p87
      $region22: #{role_aware_transformer_forward.11} parent=19 // pred_check_branch
        %184 = sbr.rel (%p182) target = $region24
      $region23: #{role_aware_transformer_forward.11} parent=19 // pred_region
        %s185 = smul.u32 4, %s19
        %p186 = scmp.lt.s32.totalorder %s16, 2
        %s187 = scalar_select %p186, %s16, 2
        %p188 = scmp.lt.s32.totalorder %s185, 3
        %s189 = scalar_select %p188, %s185, 3
        %p190 = scmp.lt.s32.totalorder %s18, 0
        %s191 = scalar_select %p190, %s18, 0
        %s192 = sadd.s32 %s191, %s189
        %s193 = smul.addr %s187, 4
        %s194 = sadd.s32 %s192, %s193
        %s195 = smul.addr %s194, 4
        %s196 = scalar_lea.vmem %s1, %s195
        %s197 = smul.u32 4, %s19
      $region24: #{role_aware_transformer_forward.11} parent=19 // pred_fallthru
        _
      // Predicated region
      $region25: #{role_aware_transformer_forward.11} parent=19 // pred_check
        %p198 = pneg %p115
      $region26: #{role_aware_transformer_forward.11} parent=19 // pred_check_branch
        %200 = sbr.rel (%p198) target = $region28
      $region27: #{role_aware_transformer_forward.11} parent=19 // pred_region
        %p201 = scmp.lt.s32.totalorder %s16, 2
        %s202 = scalar_select %p201, %s16, 2
        %p203 = scmp.lt.s32.totalorder %s18, 0
        %s204 = scalar_select %p203, %s18, 0
        %s205 = sadd.s32 %s204, %s202
        %s206 = scalar_lea.vmem %s2, %s205
      $region28: #{role_aware_transformer_forward.11} parent=19 // pred_fallthru
        _
    $region20: #{role_aware_transformer_forward.11} parent=5 // pred_fallthru
      _
    %p207 = scmp.le.s32.totalorder 1, %s9
    %p208 = scmp.lt.s32.totalorder %s9, 4
    %p209 = pnand %p207, %p208
    %p210 = pneg %p209
    // Predicated region
    $region29: #{role_aware_transformer_forward.11} parent=5 // pred_check
      _
    $region30: #{role_aware_transformer_forward.11} parent=5 // pred_check_branch
      %212 = sbr.rel (%p209) target = $region32
    $region31: #{role_aware_transformer_forward.11} parent=5 // pred_region
      %s213 = ssub.s32 %s9, 1
      %s214 = smul.u32 2, %s21
      %p215 = scmp.lt.s32.totalorder %s214, 1
      %s216 = scalar_select %p215, %s214, 1
      %p217 = scmp.lt.s32.totalorder %s23, 0
      %s218 = scalar_select %p217, %s23, 0
      %s219 = sadd.s32 %s218, %s216
      %s220 = smul.addr %s219, 4
      %s221 = scalar_lea.vmem %s0, %s220
      %p222 = pneg %p63
      %p223 = pneg %p60
      %s224 = smul.u32 4, %s23
      %p225 = scmp.lt.s32.totalorder %s20, 2
      %s226 = scalar_select %p225, %s20, 2
      %p227 = scmp.lt.s32.totalorder %s224, 3
      %s228 = scalar_select %p227, %s224, 3
      %p229 = scmp.lt.s32.totalorder %s22, 0
      %s230 = scalar_select %p229, %s22, 0
      %s231 = sadd.s32 %s230, %s228
      %s232 = smul.addr %s226, 4
      %s233 = sadd.s32 %s231, %s232
      %s234 = smul.addr %s233, 4
      %s235 = scalar_lea.vmem %s1, %s234
      %p236 = pneg %p93
      %p237 = pneg %p90
      %p238 = scmp.lt.s32.totalorder %s20, 2
      %s239 = scalar_select %p238, %s20, 2
      %p240 = scmp.lt.s32.totalorder %s22, 0
      %s241 = scalar_select %p240, %s22, 0
      %s242 = sadd.s32 %s241, %s239
      %s243 = scalar_lea.vmem %s2, %s242
      %p244 = pneg %p121
      %p245 = pneg %p118
      %p246 = pneg %p151
      %p247 = pneg %p148
      %s248 = smul.u32 2, %s21
      %p249 = scmp.lt.s32.totalorder %s20, 2
      %s250 = scalar_select %p249, %s20, 2
      %p251 = scmp.lt.s32.totalorder %s248, 1
      %s252 = scalar_select %p251, %s248, 1
      %p253 = scmp.lt.s32.totalorder %s22, 0
      %s254 = scalar_select %p253, %s22, 0
      %s255 = sadd.s32 %s254, %s252
      %s256 = smul.addr %s250, 2
      %s257 = sadd.s32 %s255, %s256
      %s258 = smul.addr %s257, 4
      %s259 = scalar_lea.vmem %s3, %s258
      %s260 = smul.u32 2, %s21
      %p261 = scmp.lt.s32.totalorder %s260, 1
      %s262 = scalar_select %p261, %s260, 1
      %p263 = scmp.lt.s32.totalorder %s23, 0
      %s264 = scalar_select %p263, %s23, 0
      %s265 = sadd.s32 %s264, %s262
      %s266 = smul.addr %s265, 4
      %s267 = scalar_lea.vmem %s0, %s266
      %s268 = smul.u32 2, %s21
      %s269 = smul.u32 4, %s23
      %p270 = scmp.lt.s32.totalorder %s20, 2
      %s271 = scalar_select %p270, %s20, 2
      %p272 = scmp.lt.s32.totalorder %s269, 3
      %s273 = scalar_select %p272, %s269, 3
      %p274 = scmp.lt.s32.totalorder %s22, 0
      %s275 = scalar_select %p274, %s22, 0
      %s276 = sadd.s32 %s275, %s273
      %s277 = smul.addr %s271, 4
      %s278 = sadd.s32 %s276, %s277
      %s279 = smul.addr %s278, 4
      %s280 = scalar_lea.vmem %s1, %s279
      %s281 = smul.u32 4, %s23
      %p282 = scmp.lt.s32.totalorder %s20, 2
      %s283 = scalar_select %p282, %s20, 2
      %p284 = scmp.lt.s32.totalorder %s22, 0
      %s285 = scalar_select %p284, %s22, 0
      %s286 = sadd.s32 %s285, %s283
      %s287 = scalar_lea.vmem %s2, %s286
      %s288 = smul.u32 2, %s21
      %p289 = scmp.lt.s32.totalorder %s20, 2
      %s290 = scalar_select %p289, %s20, 2
      %p291 = scmp.lt.s32.totalorder %s288, 1
      %s292 = scalar_select %p291, %s288, 1
      %p293 = scmp.lt.s32.totalorder %s22, 0
      %s294 = scalar_select %p293, %s22, 0
      %s295 = sadd.s32 %s294, %s292
      %s296 = smul.addr %s290, 2
      %s297 = sadd.s32 %s295, %s296
      %s298 = smul.addr %s297, 4
      %s299 = scalar_lea.vmem %s3, %s298
      %s300 = smul.u32 2, %s21
      %p302 = scmp.eq.s32.totalorder %s23, 0
      // Predicated region
      $region33: #{role_aware_transformer_forward.11} parent=31 // pred_check
        %p303 = pneg %p302
      $region34: #{role_aware_transformer_forward.11} parent=31 // pred_check_branch
        %305 = sbr.rel (%p303) target = $region36
      $region35: #{role_aware_transformer_forward.11} parent=31 // pred_region
        %vm306 = vcmask 261120
        %307 = vst.msk [vmem:[#allocation2] sm:$0xff] %vm306, 0.0
        %308 = vst.msk [vmem:[#allocation2 + $0x8] sm:$0xff] %vm306, 0.0
      $region36: #{role_aware_transformer_forward.11} parent=31 // pred_fallthru
        _
      %v309 = vld [vmem:[#allocation2] sm:$0xff]
      %v310 = vld [vmem:[#allocation2 + $0x8] sm:$0xff]
      %v311 = vld [vmem:[%s267] sm:$0xf]
      %v312 = vld [vmem:[%s267 + $0x4] sm:$0xf]
      %v313 = vld [vmem:[%s280] sm:$0xf]
      %v314 = vld [vmem:[%s280 + $0x4] sm:$0xf]
      %v315 = vld [vmem:[%s280 + $0x8] sm:$0xf]
      %v316 = vld [vmem:[%s280 + $0xc] sm:$0xf]
      %v319 = vunpack.c.l.b16 %v311
      %v320 = vunpack.c.l.b16 %v312
      %v321 = vpack.c.b16 %v320, %v319
      %v326 = vunpack.c.l.b16 %v313
      %v327 = vunpack.c.l.b16 %v314
      %v328 = vunpack.c.l.b16 %v315
      %v329 = vunpack.c.l.b16 %v316
      %v330 = vpack.c.b16 %v327, %v326
      %v331 = vpack.c.b16 %v329, %v328
      %vm334 = vcmask 261120
      %v336 = vsel %vm334, %v321, 0
      %338 = vmatpush.bf16.msra.mxu0 0
      %339 = vmatpush.bf16.msra.mxu0 0
      %340 = vmatpush.bf16.msra.mxu0 0
      %341 = vmatpush.bf16.msra.mxu0 0
      %342 = vmatpush.bf16.msra.mxu0 0
      %343 = vmatpush.bf16.msra.mxu0 0
      %344 = vmatpush.bf16.msra.mxu0 %v331
      %345 = vmatpush.bf16.msra.mxu0 %v330
      %346 = vmatmul.bf16.gmra.mxu0 %v336
      %v347 = vpop.f32.mrf.mxu0
      %v348 = vadd.f32 0.0, %v347
      %v349 = vpop.f32.mrf.mxu0
      %v350 = vadd.f32 0.0, %v349
      %351 = vdwg.mxu0
      %v352 = vadd.f32 %v309, %v348
      %v353 = vadd.f32 %v310, %v350
      %354 = vst.msk [vmem:[#allocation2] sm:$0xff] %vm334, %v352
      %355 = vst.msk [vmem:[#allocation2 + $0x8] sm:$0xff] %vm334, %v353
      // Predicated region
      $region37: #{role_aware_transformer_forward.11} parent=31 // pred_check
        %p356 = pneg %p302
      $region38: #{role_aware_transformer_forward.11} parent=31 // pred_check_branch
        %358 = sbr.rel (%p356) target = $region40
      $region39: #{role_aware_transformer_forward.11} parent=31 // pred_region
        %v359 = vld [vmem:[#allocation2] sm:$0xff]
        %v360 = vld [vmem:[#allocation2 + $0x8] sm:$0xff]
        %v361 = vld [vmem:[%s287] sm:$0x1]
        %v363 = vperm.slane %v361, 0
        %v365 = vadd.f32 %v359, %v363
        %v366 = vadd.f32 %v360, %v363
        %v367 = vpack.c.bf16 %v365, %v365
        %v368 = vpack.c.bf16 %v366, %v366
        %vm369 = vcmask 257024
        %370 = vst.msk [vmem:[%s299] sm:$0xf] %vm369, %v367
        %371 = vst.msk [vmem:[%s299 + $0x4] sm:$0xf] %vm369, %v368
      $region40: #{role_aware_transformer_forward.11} parent=31 // pred_fallthru
        _
      %s372 = smul.u32 2, %s21
      %p373 = scmp.lt.s32.totalorder %s20, 2
      %s374 = scalar_select %p373, %s20, 2
      %p375 = scmp.lt.s32.totalorder %s372, 1
      %s376 = scalar_select %p375, %s372, 1
      %p377 = scmp.lt.s32.totalorder %s22, 0
      %s378 = scalar_select %p377, %s22, 0
      %s379 = sadd.s32 %s378, %s376
      %s380 = smul.addr %s374, 2
      %s381 = sadd.s32 %s379, %s380
      %s382 = smul.addr %s381, 4
      %s383 = scalar_lea.vmem %s3, %s382
      // Predicated region
      $region41: #{role_aware_transformer_forward.11} parent=31 // pred_check
        %p384 = pneg %p148
      $region42: #{role_aware_transformer_forward.11} parent=31 // pred_check_branch
        %386 = sbr.rel (%p384) target = $region44
      $region43: #{role_aware_transformer_forward.11} parent=31 // pred_region
        %s387 = smul.u32 2, %s21
      $region44: #{role_aware_transformer_forward.11} parent=31 // pred_fallthru
        _
    $region32: #{role_aware_transformer_forward.11} parent=5 // pred_fallthru
      _
    %p388 = scmp.le.s32.totalorder 2, %s9
    // Predicated region
    $region45: #{role_aware_transformer_forward.11} parent=5 // pred_check
      %p389 = pneg %p388
    $region46: #{role_aware_transformer_forward.11} parent=5 // pred_check_branch
      %391 = sbr.rel (%p389) target = $region48
    $region47: #{role_aware_transformer_forward.11} parent=5 // pred_region
      %s392 = ssub.s32 %s9, 2
      // Predicated region
      $region49: #{role_aware_transformer_forward.11} parent=47 // pred_check
        %p393 = pneg %p154
      $region50: #{role_aware_transformer_forward.11} parent=47 // pred_check_branch
        %395 = sbr.rel (%p393) target = $region52
      $region51: #{role_aware_transformer_forward.11} parent=47 // pred_region
        %s396 = smul.u32 2, %s25
        %p397 = scmp.lt.s32.totalorder %s24, 2
        %s398 = scalar_select %p397, %s24, 2
        %p399 = scmp.lt.s32.totalorder %s396, 1
        %s400 = scalar_select %p399, %s396, 1
        %p401 = scmp.lt.s32.totalorder %s26, 0
        %s402 = scalar_select %p401, %s26, 0
        %s403 = sadd.s32 %s402, %s400
        %s404 = smul.addr %s398, 2
        %s405 = sadd.s32 %s403, %s404
        %s406 = smul.addr %s405, 4
        %s407 = scalar_lea.vmem %s3, %s406
      $region52: #{role_aware_transformer_forward.11} parent=47 // pred_fallthru
        _
    $region48: #{role_aware_transformer_forward.11} parent=5 // pred_fallthru
      _
  $region6: #{role_aware_transformer_forward.11} parent=0 // loop_footer
    %s13 = sadd.s32 1, %s9
  $region7: #{role_aware_transformer_forward.11} parent=0 // loop_footer_branch
    %8 = sbr.rel target = $region3
  $region8: #{role_aware_transformer_forward.11} parent=0 // loop_exit
    _

// kernel: role_aware_transformer_forward.12
$region0: #{role_aware_transformer_forward.12}
  #allocation0 [shape = 'u32[]', space=smem, size = 0x4, offset = 0x4, fixed_abs, tag = 'smem constant byte address 0x4 - core index']
  #allocation1 [shape = 'u32[72,128]{1,0:T(1,128)}', space=vmem, size = 0x9000, scoped, tag = 'internal scratch']
  #allocation2 [shape = 'f32[2,8,1]{2,1,0:T(8,128)}', space=vmem, size = 0x2000, scoped, tag = 'scratch operand']
  #allocation3 [shape = 'f32[2,8,1]{2,1,0:T(8,128)}', space=vmem, size = 0x2000, scoped, tag = 'scratch operand']
  #allocation4 [shape = 'f32[2,8,16]{2,1,0:T(8,128)}', space=vmem, size = 0x2000, scoped, tag = 'scratch operand']
  %s0 = inlined_call_operand.vmem [shape: f32[2,1,8], index: 0, kind: input, shape index: {}]
  %s1 = inlined_call_operand.vmem [shape: bf16[3,2,8,32], index: 1, kind: input, shape index: {}, may-alias: {1,2,3}]
  %s2 = inlined_call_operand.vmem [shape: bf16[3,2,8,32], index: 2, kind: input, shape index: {}, may-alias: {1,2,3}]
  %s3 = inlined_call_operand.vmem [shape: bf16[3,2,8,32], index: 3, kind: input, shape index: {}, may-alias: {1,2,3}]
  %s4 = inlined_call_operand.vmem [shape: bf16[2,8,32], index: 4, kind: output, shape index: {}]
  %s5 = sld [smem:[#allocation0]]
  $region57: #{role_aware_transformer_forward.12} parent=0
    _
  %s7 = ssub.s32 1, %s5
  %s8 = scalar_select 0, %s7, %s5
  loop: start=0, step=1, limit=4
  $region2: #{role_aware_transformer_forward.12} parent=0 // loop_pre_header
    _
  $region3: #{role_aware_transformer_forward.12} parent=0 // loop_header
    %s10 = sphi 0, %s14
    %p11 = scmp.ge.s32.totalorder %s10, 4
    %s17 = sphi 0, %s36
    %s18 = sphi 0, %s32
    %s19 = sphi 0, %s28
    %s20 = sphi 0, %s17
    %s21 = sphi 0, %s18
    %s22 = sphi 0, %s19
    %s23 = sphi 0, %s20
    %s24 = sphi 0, %s21
    %s25 = sphi 0, %s22
    %s41 = sphi 0, %s43
    %s44 = sphi 0, %s41
    %s45 = sphi 0, %s44
    %s61 = sphi 0, %s45
    %s69 = sphi 0, %s71
    %s72 = sphi 0, %s69
    %s73 = sphi 0, %s72
    %s89 = sphi 0, %s73
    %s97 = sphi 0, %s99
    %s100 = sphi 0, %s97
    %s101 = sphi 0, %s100
    %s117 = sphi 0, %s101
    %s125 = sphi 0, %s127
    %s128 = sphi 0, %s125
    %s129 = sphi 0, %s128
    %s145 = sphi 0, %s129
    %s153 = sphi 0, %s155
    %s156 = sphi 0, %s153
    %s157 = sphi 0, %s156
    %s173 = sphi 0, %s157
  $region4: #{role_aware_transformer_forward.12} parent=0 // loop_header_branch
    %13 = sbr.rel (%p11) target = $region8
  $region5: #{role_aware_transformer_forward.12} parent=0 // loop_body
    %s15 = ssub.s32 %s10, 1
    %s16 = ssub.s32 %s10, 2
    %s26 = sadd.s32 1, %s19
    %p27 = scmp.ge.s32.totalorder %s26, 1
    %s28 = scalar_select %p27, 0, %s26
    %s29 = sadd.s32 1, %s18
    %s30 = scalar_select %p27, %s29, %s18
    %p31 = scmp.ge.s32.totalorder %s30, 1
    %s32 = scalar_select %p31, 0, %s30
    %s33 = sadd.s32 1, %s17
    %s34 = scalar_select %p31, %s33, %s17
    %p35 = scmp.ge.s32.totalorder %s34, 2
    %s36 = scalar_select %p35, 0, %s34
    %s37 = ssub.s32 %s17, %s36
    %s38 = ssub.s32 %s19, %s28
    %s39 = sor.u32 %s37, %s38
    %p40 = scmp.eq.s32.totalorder %s39, 0
    %s42 = sadd.s32 %s41, 1
    %s43 = scalar_select %p40, %s41, %s42
    %p46 = pneg %p40
    %p47 = scmp.eq.s32.totalorder %s10, 1
    %p48 = por %p46, %p47
    %p49 = scmp.ne.s32.totalorder %s41, %s44
    %p50 = scmp.eq.s32.totalorder %s10, 0
    %p51 = por %p49, %p50
    %p52 = scmp.ne.s32.totalorder %s41, %s44
    %p53 = scmp.eq.s32.totalorder %s15, 1
    %p54 = por %p52, %p53
    %p55 = scmp.ne.s32.totalorder %s44, %s45
    %p56 = scmp.eq.s32.totalorder %s15, 0
    %p57 = por %p55, %p56
    %p58 = scmp.ne.s32.totalorder %s44, %s45
    %p59 = scmp.eq.s32.totalorder %s16, 1
    %p60 = por %p58, %p59
    %p62 = scmp.ne.s32.totalorder %s45, %s61
    %p63 = scmp.eq.s32.totalorder %s16, 0
    %p64 = por %p62, %p63
    %s65 = ssub.s32 %s17, %s36
    %s66 = ssub.s32 %s18, %s32
    %s67 = sor.u32 %s65, %s66
    %p68 = scmp.eq.s32.totalorder %s67, 0
    %s70 = sadd.s32 %s69, 1
    %s71 = scalar_select %p68, %s69, %s70
    %p74 = pneg %p68
    %p75 = scmp.eq.s32.totalorder %s10, 1
    %p76 = por %p74, %p75
    %p77 = scmp.ne.s32.totalorder %s69, %s72
    %p78 = scmp.eq.s32.totalorder %s10, 0
    %p79 = por %p77, %p78
    %p80 = scmp.ne.s32.totalorder %s69, %s72
    %p81 = scmp.eq.s32.totalorder %s15, 1
    %p82 = por %p80, %p81
    %p83 = scmp.ne.s32.totalorder %s72, %s73
    %p84 = scmp.eq.s32.totalorder %s15, 0
    %p85 = por %p83, %p84
    %p86 = scmp.ne.s32.totalorder %s72, %s73
    %p87 = scmp.eq.s32.totalorder %s16, 1
    %p88 = por %p86, %p87
    %p90 = scmp.ne.s32.totalorder %s73, %s89
    %p91 = scmp.eq.s32.totalorder %s16, 0
    %p92 = por %p90, %p91
    %s93 = ssub.s32 %s17, %s36
    %s94 = ssub.s32 %s19, %s28
    %s95 = sor.u32 %s93, %s94
    %p96 = scmp.eq.s32.totalorder %s95, 0
    %s98 = sadd.s32 %s97, 1
    %s99 = scalar_select %p96, %s97, %s98
    %p102 = pneg %p96
    %p103 = scmp.eq.s32.totalorder %s10, 1
    %p104 = por %p102, %p103
    %p105 = scmp.ne.s32.totalorder %s97, %s100
    %p106 = scmp.eq.s32.totalorder %s10, 0
    %p107 = por %p105, %p106
    %p108 = scmp.ne.s32.totalorder %s97, %s100
    %p109 = scmp.eq.s32.totalorder %s15, 1
    %p110 = por %p108, %p109
    %p111 = scmp.ne.s32.totalorder %s100, %s101
    %p112 = scmp.eq.s32.totalorder %s15, 0
    %p113 = por %p111, %p112
    %p114 = scmp.ne.s32.totalorder %s100, %s101
    %p115 = scmp.eq.s32.totalorder %s16, 1
    %p116 = por %p114, %p115
    %p118 = scmp.ne.s32.totalorder %s101, %s117
    %p119 = scmp.eq.s32.totalorder %s16, 0
    %p120 = por %p118, %p119
    %s121 = ssub.s32 %s17, %s36
    %s122 = ssub.s32 %s19, %s28
    %s123 = sor.u32 %s121, %s122
    %p124 = scmp.eq.s32.totalorder %s123, 0
    %s126 = sadd.s32 %s125, 1
    %s127 = scalar_select %p124, %s125, %s126
    %p130 = pneg %p124
    %p131 = scmp.eq.s32.totalorder %s10, 1
    %p132 = por %p130, %p131
    %p133 = scmp.ne.s32.totalorder %s125, %s128
    %p134 = scmp.eq.s32.totalorder %s10, 0
    %p135 = por %p133, %p134
    %p136 = scmp.ne.s32.totalorder %s125, %s128
    %p137 = scmp.eq.s32.totalorder %s15, 1
    %p138 = por %p136, %p137
    %p139 = scmp.ne.s32.totalorder %s128, %s129
    %p140 = scmp.eq.s32.totalorder %s15, 0
    %p141 = por %p139, %p140
    %p142 = scmp.ne.s32.totalorder %s128, %s129
    %p143 = scmp.eq.s32.totalorder %s16, 1
    %p144 = por %p142, %p143
    %p146 = scmp.ne.s32.totalorder %s129, %s145
    %p147 = scmp.eq.s32.totalorder %s16, 0
    %p148 = por %p146, %p147
    %s149 = ssub.s32 %s17, %s36
    %s150 = ssub.s32 %s18, %s32
    %s151 = sor.u32 %s149, %s150
    %p152 = scmp.eq.s32.totalorder %s151, 0
    %s154 = sadd.s32 %s153, 1
    %s155 = scalar_select %p152, %s153, %s154
    %p158 = pneg %p152
    %p159 = scmp.eq.s32.totalorder %s10, 1
    %p160 = por %p158, %p159
    %p161 = scmp.ne.s32.totalorder %s153, %s156
    %p162 = scmp.eq.s32.totalorder %s10, 0
    %p163 = por %p161, %p162
    %p164 = scmp.ne.s32.totalorder %s153, %s156
    %p165 = scmp.eq.s32.totalorder %s15, 1
    %p166 = por %p164, %p165
    %p167 = scmp.ne.s32.totalorder %s156, %s157
    %p168 = scmp.eq.s32.totalorder %s15, 0
    %p169 = por %p167, %p168
    %p170 = scmp.ne.s32.totalorder %s156, %s157
    %p171 = scmp.eq.s32.totalorder %s16, 1
    %p172 = por %p170, %p171
    %p174 = scmp.ne.s32.totalorder %s157, %s173
    %p175 = scmp.eq.s32.totalorder %s16, 0
    %p176 = por %p174, %p175
    %p177 = scmp.le.s32.totalorder 1, %s10
    %p178 = scmp.lt.s32.totalorder %s10, 3
    %p179 = pnand %p177, %p178
    %p180 = pneg %p179
    // Predicated region
    $region9: #{role_aware_transformer_forward.12} parent=5 // pred_check
      _
    $region10: #{role_aware_transformer_forward.12} parent=5 // pred_check_branch
      %182 = sbr.rel (%p179) target = $region12
    $region11: #{role_aware_transformer_forward.12} parent=5 // pred_region
      %s183 = ssub.s32 %s10, 1
    $region12: #{role_aware_transformer_forward.12} parent=5 // pred_fallthru
      _
    %p184 = scmp.lt.s32.totalorder %s10, 2
    // Predicated region
    $region13: #{role_aware_transformer_forward.12} parent=5 // pred_check
      %p185 = pneg %p184
    $region14: #{role_aware_transformer_forward.12} parent=5 // pred_check_branch
      %187 = sbr.rel (%p185) target = $region16
    $region15: #{role_aware_transformer_forward.12} parent=5 // pred_region
      // Predicated region
      $region17: #{role_aware_transformer_forward.12} parent=15 // pred_check
        %p188 = pneg %p51
      $region18: #{role_aware_transformer_forward.12} parent=15 // pred_check_branch
        %190 = sbr.rel (%p188) target = $region20
      $region19: #{role_aware_transformer_forward.12} parent=15 // pred_region
        %p191 = scmp.lt.s32.totalorder %s17, 1
        %s192 = scalar_select %p191, %s17, 1
        %p193 = scmp.lt.s32.totalorder %s19, 0
        %s194 = scalar_select %p193, %s19, 0
        %s195 = sadd.s32 %s194, %s192
        %s196 = scalar_lea.vmem %s0, %s195
      $region20: #{role_aware_transformer_forward.12} parent=15 // pred_fallthru
        _
      // Predicated region
      $region21: #{role_aware_transformer_forward.12} parent=15 // pred_check
        %p197 = pneg %p79
      $region22: #{role_aware_transformer_forward.12} parent=15 // pred_check_branch
        %199 = sbr.rel (%p197) target = $region24
      $region23: #{role_aware_transformer_forward.12} parent=15 // pred_region
        %p200 = scmp.lt.s32.totalorder %s17, 1
        %s201 = scalar_select %p200, %s17, 1
        %p202 = scmp.lt.s32.totalorder %s18, 0
        %s203 = scalar_select %p202, %s18, 0
        %s204 = sadd.s32 %s203, %s201
        %s205 = smul.addr %s204, 4
        %s206 = scalar_lea.vmem %s1, %s205
      $region24: #{role_aware_transformer_forward.12} parent=15 // pred_fallthru
        _
      // Predicated region
      $region25: #{role_aware_transformer_forward.12} parent=15 // pred_check
        %p207 = pneg %p107
      $region26: #{role_aware_transformer_forward.12} parent=15 // pred_check_branch
        %209 = sbr.rel (%p207) target = $region28
      $region27: #{role_aware_transformer_forward.12} parent=15 // pred_region
        %p210 = scmp.lt.s32.totalorder %s17, 1
        %s211 = scalar_select %p210, %s17, 1
        %p212 = scmp.lt.s32.totalorder %s19, 0
        %s213 = scalar_select %p212, %s19, 0
        %s214 = sadd.s32 %s213, %s211
        %s215 = sadd.s32 %s214, 2
        %s216 = smul.addr %s215, 4
        %s217 = scalar_lea.vmem %s2, %s216
      $region28: #{role_aware_transformer_forward.12} parent=15 // pred_fallthru
        _
      // Predicated region
      $region29: #{role_aware_transformer_forward.12} parent=15 // pred_check
        %p218 = pneg %p135
      $region30: #{role_aware_transformer_forward.12} parent=15 // pred_check_branch
        %220 = sbr.rel (%p218) target = $region32
      $region31: #{role_aware_transformer_forward.12} parent=15 // pred_region
        %p221 = scmp.lt.s32.totalorder %s17, 1
        %s222 = scalar_select %p221, %s17, 1
        %p223 = scmp.lt.s32.totalorder %s19, 0
        %s224 = scalar_select %p223, %s19, 0
        %s225 = sadd.s32 %s224, %s222
        %s226 = sadd.s32 %s225, 4
        %s227 = smul.addr %s226, 4
        %s228 = scalar_lea.vmem %s3, %s227
      $region32: #{role_aware_transformer_forward.12} parent=15 // pred_fallthru
        _
    $region16: #{role_aware_transformer_forward.12} parent=5 // pred_fallthru
      _
    %p229 = scmp.le.s32.totalorder 1, %s10
    %p230 = scmp.lt.s32.totalorder %s10, 3
    %p231 = pnand %p229, %p230
    %p232 = pneg %p231
    // Predicated region
    $region33: #{role_aware_transformer_forward.12} parent=5 // pred_check
      _
    $region34: #{role_aware_transformer_forward.12} parent=5 // pred_check_branch
      %234 = sbr.rel (%p231) target = $region36
    $region35: #{role_aware_transformer_forward.12} parent=5 // pred_region
      %s235 = ssub.s32 %s10, 1
      %p236 = scmp.lt.s32.totalorder %s20, 1
      %s237 = scalar_select %p236, %s20, 1
      %p238 = scmp.lt.s32.totalorder %s22, 0
      %s239 = scalar_select %p238, %s22, 0
      %s240 = sadd.s32 %s239, %s237
      %s241 = scalar_lea.vmem %s0, %s240
      %p242 = pneg %p57
      %p243 = pneg %p54
      %p244 = scmp.lt.s32.totalorder %s20, 1
      %s245 = scalar_select %p244, %s20, 1
      %p246 = scmp.lt.s32.totalorder %s21, 0
      %s247 = scalar_select %p246, %s21, 0
      %s248 = sadd.s32 %s247, %s245
      %s249 = smul.addr %s248, 4
      %s250 = scalar_lea.vmem %s1, %s249
      %p251 = pneg %p85
      %p252 = pneg %p82
      %p253 = scmp.lt.s32.totalorder %s20, 1
      %s254 = scalar_select %p253, %s20, 1
      %p255 = scmp.lt.s32.totalorder %s22, 0
      %s256 = scalar_select %p255, %s22, 0
      %s257 = sadd.s32 %s256, %s254
      %s258 = sadd.s32 %s257, 2
      %s259 = smul.addr %s258, 4
      %s260 = scalar_lea.vmem %s2, %s259
      %p261 = pneg %p113
      %p262 = pneg %p110
      %p263 = scmp.lt.s32.totalorder %s20, 1
      %s264 = scalar_select %p263, %s20, 1
      %p265 = scmp.lt.s32.totalorder %s22, 0
      %s266 = scalar_select %p265, %s22, 0
      %s267 = sadd.s32 %s266, %s264
      %s268 = sadd.s32 %s267, 4
      %s269 = smul.addr %s268, 4
      %s270 = scalar_lea.vmem %s3, %s269
      %p271 = pneg %p141
      %p272 = pneg %p138
      %p273 = pneg %p169
      %p274 = pneg %p166
      %p275 = scmp.lt.s32.totalorder %s20, 1
      %s276 = scalar_select %p275, %s20, 1
      %p277 = scmp.lt.s32.totalorder %s21, 0
      %s278 = scalar_select %p277, %s21, 0
      %s279 = sadd.s32 %s278, %s276
      %s280 = smul.addr %s279, 4
      %s281 = scalar_lea.vmem %s4, %s280
      %p282 = scmp.lt.s32.totalorder %s20, 1
      %s283 = scalar_select %p282, %s20, 1
      %p284 = scmp.lt.s32.totalorder %s22, 0
      %s285 = scalar_select %p284, %s22, 0
      %s286 = sadd.s32 %s285, %s283
      %s287 = scalar_lea.vmem %s0, %s286
      %p288 = scmp.lt.s32.totalorder %s20, 1
      %s289 = scalar_select %p288, %s20, 1
      %p290 = scmp.lt.s32.totalorder %s21, 0
      %s291 = scalar_select %p290, %s21, 0
      %s292 = sadd.s32 %s291, %s289
      %s293 = smul.addr %s292, 4
      %s294 = scalar_lea.vmem %s1, %s293
      %p295 = scmp.lt.s32.totalorder %s20, 1
      %s296 = scalar_select %p295, %s20, 1
      %p297 = scmp.lt.s32.totalorder %s22, 0
      %s298 = scalar_select %p297, %s22, 0
      %s299 = sadd.s32 %s298, %s296
      %s300 = sadd.s32 %s299, 2
      %s301 = smul.addr %s300, 4
      %s302 = scalar_lea.vmem %s2, %s301
      %p303 = scmp.lt.s32.totalorder %s20, 1
      %s304 = scalar_select %p303, %s20, 1
      %p305 = scmp.lt.s32.totalorder %s22, 0
      %s306 = scalar_select %p305, %s22, 0
      %s307 = sadd.s32 %s306, %s304
      %s308 = sadd.s32 %s307, 4
      %s309 = smul.addr %s308, 4
      %s310 = scalar_lea.vmem %s3, %s309
      %p311 = scmp.lt.s32.totalorder %s20, 1
      %s312 = scalar_select %p311, %s20, 1
      %p313 = scmp.lt.s32.totalorder %s21, 0
      %s314 = scalar_select %p313, %s21, 0
      %s315 = sadd.s32 %s314, %s312
      %s316 = smul.addr %s315, 4
      %s317 = scalar_lea.vmem %s4, %s316
      %p319 = scmp.eq.s32.totalorder %s22, 0
      // Predicated region
      $region37: #{role_aware_transformer_forward.12} parent=35 // pred_check
        %p320 = pneg %p319
      $region38: #{role_aware_transformer_forward.12} parent=35 // pred_check_branch
        %322 = sbr.rel (%p320) target = $region40
      $region39: #{role_aware_transformer_forward.12} parent=35 // pred_region
        %vm323 = vcmask 7168
        %324 = vst.msk [vmem:[#allocation2] sm:$0xff] %vm323, -1e+30
        %325 = vst.msk [vmem:[#allocation2 + $0x8] sm:$0xff] %vm323, -1e+30
        %326 = vst.msk [vmem:[#allocation3] sm:$0xff] %vm323, 0.0
        %327 = vst.msk [vmem:[#allocation3 + $0x8] sm:$0xff] %vm323, 0.0
        %vm328 = vcmask 130048
        %329 = vst.msk [vmem:[#allocation4] sm:$0xff] %vm328, 0.0
        %330 = vst.msk [vmem:[#allocation4 + $0x8] sm:$0xff] %vm328, 0.0
      $region40: #{role_aware_transformer_forward.12} parent=35 // pred_fallthru
        _
      %v331 = vld [vmem:[%s287] sm:$0x1]
      %v332 = vld [vmem:[%s294] sm:$0xf]
      %v333 = vunpack.c.l.bf16 %v332
      %v334 = vmul.f32 %v333, 0.25
      %v335 = vpack.c.bf16 %v334, %v334
      %v336 = vld [vmem:[%s302] sm:$0xf]
      %v337 = vld [vmem:[%s310] sm:$0xf]
      %v339 = vperm.slane %v331, 0
      %vm341 = vcmask 130048
      %v343 = vsel %vm341, %v335, 0
      %v346 = vsel %vm341, %v336, 0
      %348 = vmatpush.bf16.xpose.msra.mxu0 0
      %349 = vmatpush.bf16.xpose.msra.mxu0 0
      %350 = vmatpush.bf16.xpose.msra.mxu0 0
      %351 = vmatpush.bf16.xpose.msra.mxu0 0
      %352 = vmatpush.bf16.xpose.msra.mxu0 0
      %353 = vmatpush.bf16.xpose.msra.mxu0 0
      %354 = vmatpush.bf16.xpose.msra.mxu0 0
      %355 = vmatpush.bf16.xpose.msra.mxu0 %v346
      %356 = vmatmul.bf16.gmra.mxu0 %v343
      %v357 = vpop.f32.mrf.mxu0
      %v358 = vadd.f32 %v339, %v357
      %v359 = vpop.f32.mrf.mxu0
      %360 = vdwg.mxu0
      %v361 = vld [vmem:[#allocation2] sm:$0xff]
      %vm362 = vcmask 64512
      %v363 = vsel %vm362, %v358, -inf
      %364 = vmax.xlane.f32.xlu0 %v363
      %v365 = vpop.xlane.xlu0 %364
      %v366 = vmax.f32 %v361, %v365
      %v367 = vsub.f32 %v361, %v366
      %v368 = vmul.f32 %v367, 1.442695
      %v369 = vpow.pop %v368
      %371 = vset.pattern.permute.xlu0 0
      %372 = vperm.xlu0 %371, %v366
      %v373 = vpop.permute.xlu0 %372
      %v375 = vsub.f32 %v358, %v373
      %v376 = vmul.f32 %v375, 1.442695
      %v377 = vpow.pop %v376
      %v378 = vld [vmem:[#allocation3] sm:$0xff]
      %v379 = vmul.f32 %v369, %v378
      %v380 = vsel %vm362, %v377, 0.0
      %381 = vadd.xlane.f32.xlu0 %v380
      %v382 = vpop.xlane.xlu0 %381
      %v383 = vadd.f32 %v379, %v382
      %vm384 = vcmask 7168
      %385 = vst.msk [vmem:[#allocation3] sm:$0xff] %vm384, %v383
      %v386 = vld [vmem:[#allocation4] sm:$0xff]
      %388 = vset.pattern.permute.xlu0 0
      %389 = vperm.xlu0 %388, %v369
      %v390 = vpop.permute.xlu0 %389
      %v392 = vmul.f32 %v390, %v386
      %v393 = vpack.c.bf16 %v377, %v377
      %v395 = vsel %vm362, %v393, 0
      %vm397 = vcmask 1043456
      %v399 = vsel %vm397, %v337, 0
      %401 = vmatpush.bf16.msra.mxu0 0
      %402 = vmatpush.bf16.msra.mxu0 0
      %403 = vmatpush.bf16.msra.mxu0 0
      %404 = vmatpush.bf16.msra.mxu0 0
      %405 = vmatpush.bf16.msra.mxu0 0
      %406 = vmatpush.bf16.msra.mxu0 0
      %407 = vmatpush.bf16.msra.mxu0 0
      %408 = vmatpush.bf16.msra.mxu0 %v399
      %409 = vmatmul.bf16.gmra.mxu0 %v395
      %v410 = vpop.f32.mrf.mxu0
      %v411 = vadd.f32 0.0, %v410
      %v412 = vpop.f32.mrf.mxu0
      %413 = vdwg.mxu0
      %v414 = vadd.f32 %v392, %v411
      %415 = vst.msk [vmem:[#allocation4] sm:$0xff] %vm341, %v414
      %416 = vst.msk [vmem:[#allocation2] sm:$0xff] %vm384, %v366
      %v418 = vunpack.c.l.b16 %v335
      %v419 = vpack.c.b16 %v418, %v418
      %420 = vrot.lane.b32.xlu0 %v419, 112
      %v421 = vpop.permute.xlu0 %420
      %v423 = vunpack.c.l.b16 %v336
      %v424 = vpack.c.b16 %v423, %v423
      %425 = vrot.lane.b32.xlu0 %v424, 112
      %v426 = vpop.permute.xlu0 %425
      %v428 = vsel %vm341, %v421, 0
      %v431 = vsel %vm341, %v426, 0
      %433 = vmatpush.bf16.xpose.msra.mxu0 0
      %434 = vmatpush.bf16.xpose.msra.mxu0 0
      %435 = vmatpush.bf16.xpose.msra.mxu0 0
      %436 = vmatpush.bf16.xpose.msra.mxu0 0
      %437 = vmatpush.bf16.xpose.msra.mxu0 0
      %438 = vmatpush.bf16.xpose.msra.mxu0 0
      %439 = vmatpush.bf16.xpose.msra.mxu0 0
      %440 = vmatpush.bf16.xpose.msra.mxu0 %v431
      %441 = vmatmul.bf16.gmra.mxu0 %v428
      %v442 = vpop.f32.mrf.mxu0
      %v443 = vadd.f32 %v339, %v442
      %v444 = vpop.f32.mrf.mxu0
      %445 = vdwg.mxu0
      %s446 = scalar_lea.vmem [#allocation2], 8
      %v447 = vld [vmem:[%s446] sm:$0xff]
      %v448 = vsel %vm362, %v443, -inf
      %449 = vmax.xlane.f32.xlu0 %v448
      %v450 = vpop.xlane.xlu0 %449
      %v451 = vmax.f32 %v447, %v450
      %v452 = vsub.f32 %v447, %v451
      %v453 = vmul.f32 %v452, 1.442695
      %v454 = vpow.pop %v453
      %456 = vset.pattern.permute.xlu0 0
      %457 = vperm.xlu0 %456, %v451
      %v458 = vpop.permute.xlu0 %457
      %v460 = vsub.f32 %v443, %v458
      %v461 = vmul.f32 %v460, 1.442695
      %v462 = vpow.pop %v461
      %s463 = scalar_lea.vmem [#allocation3], 8
      %v464 = vld [vmem:[%s463] sm:$0xff]
      %v465 = vmul.f32 %v454, %v464
      %v466 = vsel %vm362, %v462, 0.0
      %467 = vadd.xlane.f32.xlu0 %v466
      %v468 = vpop.xlane.xlu0 %467
      %v469 = vadd.f32 %v465, %v468
      %470 = vst.msk [vmem:[%s463] sm:$0xff] %vm384, %v469
      %s471 = scalar_lea.vmem [#allocation4], 8
      %v472 = vld [vmem:[%s471] sm:$0xff]
      %474 = vset.pattern.permute.xlu0 0
      %475 = vperm.xlu0 %474, %v454
      %v476 = vpop.permute.xlu0 %475
      %v478 = vmul.f32 %v476, %v472
      %v479 = vpack.c.bf16 %v462, %v462
      %v481 = vunpack.c.l.b16 %v337
      %v482 = vpack.c.b16 %v481, %v481
      %483 = vrot.lane.b32.xlu0 %v482, 112
      %v484 = vpop.permute.xlu0 %483
      %v486 = vsel %vm362, %v479, 0
      %v489 = vsel %vm397, %v484, 0
      %491 = vmatpush.bf16.msra.mxu0 0
      %492 = vmatpush.bf16.msra.mxu0 0
      %493 = vmatpush.bf16.msra.mxu0 0
      %494 = vmatpush.bf16.msra.mxu0 0
      %495 = vmatpush.bf16.msra.mxu0 0
      %496 = vmatpush.bf16.msra.mxu0 0
      %497 = vmatpush.bf16.msra.mxu0 0
      %498 = vmatpush.bf16.msra.mxu0 %v489
      %499 = vmatmul.bf16.gmra.mxu0 %v486
      %v500 = vpop.f32.mrf.mxu0
      %v501 = vadd.f32 0.0, %v500
      %v502 = vpop.f32.mrf.mxu0
      %503 = vdwg.mxu0
      %v504 = vadd.f32 %v478, %v501
      %505 = vst.msk [vmem:[%s471] sm:$0xff] %vm341, %v504
      %506 = vst.msk [vmem:[%s446] sm:$0xff] %vm384, %v451
      // Predicated region
      $region41: #{role_aware_transformer_forward.12} parent=35 // pred_check
        %p507 = pneg %p319
      $region42: #{role_aware_transformer_forward.12} parent=35 // pred_check_branch
        %509 = sbr.rel (%p507) target = $region44
      $region43: #{role_aware_transformer_forward.12} parent=35 // pred_region
        %v510 = vld [vmem:[#allocation3] sm:$0xff]
        %v511 = vrcp.pop %v510
        %v512 = vld [vmem:[#allocation4] sm:$0xff]
        %514 = vset.pattern.permute.xlu0 0
        %515 = vperm.xlu0 %514, %v511
        %v516 = vpop.permute.xlu0 %515
        %v518 = vmul.f32 %v512, %v516
        %v519 = vpack.c.bf16 %v518, %v518
        %vm520 = vcmask 125952
        %521 = vst.msk [vmem:[%s317] sm:$0xf] %vm520, %v519
        %v522 = vld [vmem:[%s463] sm:$0xff]
        %v523 = vrcp.pop %v522
        %v524 = vld [vmem:[%s471] sm:$0xff]
        %526 = vset.pattern.permute.xlu0 0
        %527 = vperm.xlu0 %526, %v523
        %v528 = vpop.permute.xlu0 %527
        %v530 = vmul.f32 %v524, %v528
        %v531 = vpack.c.bf16 %v530, %v530
        %533 = vrot.lane.b32.xlu0 %v531, 16
        %v534 = vpop.permute.xlu0 %533
        %vm536 = vcmask 257152
        %537 = vst.msk [vmem:[%s317] sm:$0xf] %vm536, %v534
      $region44: #{role_aware_transformer_forward.12} parent=35 // pred_fallthru
        _
      %p538 = scmp.lt.s32.totalorder %s20, 1
      %s539 = scalar_select %p538, %s20, 1
      %p540 = scmp.lt.s32.totalorder %s21, 0
      %s541 = scalar_select %p540, %s21, 0
      %s542 = sadd.s32 %s541, %s539
      %s543 = smul.addr %s542, 4
      %s544 = scalar_lea.vmem %s4, %s543
      // Predicated region
      $region45: #{role_aware_transformer_forward.12} parent=35 // pred_check
        %p545 = pneg %p166
      $region46: #{role_aware_transformer_forward.12} parent=35 // pred_check_branch
        %547 = sbr.rel (%p545) target = $region48
      $region47: #{role_aware_transformer_forward.12} parent=35 // pred_region
        _
      $region48: #{role_aware_transformer_forward.12} parent=35 // pred_fallthru
        _
    $region36: #{role_aware_transformer_forward.12} parent=5 // pred_fallthru
      _
    %p548 = scmp.le.s32.totalorder 2, %s10
    // Predicated region
    $region49: #{role_aware_transformer_forward.12} parent=5 // pred_check
      %p549 = pneg %p548
    $region50: #{role_aware_transformer_forward.12} parent=5 // pred_check_branch
      %551 = sbr.rel (%p549) target = $region52
    $region51: #{role_aware_transformer_forward.12} parent=5 // pred_region
      %s552 = ssub.s32 %s10, 2
      // Predicated region
      $region53: #{role_aware_transformer_forward.12} parent=51 // pred_check
        %p553 = pneg %p172
      $region54: #{role_aware_transformer_forward.12} parent=51 // pred_check_branch
        %555 = sbr.rel (%p553) target = $region56
      $region55: #{role_aware_transformer_forward.12} parent=51 // pred_region
        %p556 = scmp.lt.s32.totalorder %s23, 1
        %s557 = scalar_select %p556, %s23, 1
        %p558 = scmp.lt.s32.totalorder %s24, 0
        %s559 = scalar_select %p558, %s24, 0
        %s560 = sadd.s32 %s559, %s557
        %s561 = smul.addr %s560, 4
        %s562 = scalar_lea.vmem %s4, %s561
      $region56: #{role_aware_transformer_forward.12} parent=51 // pred_fallthru
        _
    $region52: #{role_aware_transformer_forward.12} parent=5 // pred_fallthru
      _
  $region6: #{role_aware_transformer_forward.12} parent=0 // loop_footer
    %s14 = sadd.s32 1, %s10
  $region7: #{role_aware_transformer_forward.12} parent=0 // loop_footer_branch
    %9 = sbr.rel target = $region3
  $region8: #{role_aware_transformer_forward.12} parent=0 // loop_exit
    _

// kernel: role_aware_transformer_forward.19
$region0: #{role_aware_transformer_forward.19}
  #allocation0 [shape = 'u32[]', space=smem, size = 0x4, offset = 0x4, fixed_abs, tag = 'smem constant byte address 0x4 - core index']
  #allocation1 [shape = 'u32[72,128]{1,0:T(1,128)}', space=vmem, size = 0x9000, scoped, tag = 'internal scratch']
  #allocation2 [shape = 'f32[2,32]{1,0:T(2,128)}', space=vmem, size = 0x400, scoped, tag = 'scratch operand']
  %s0 = inlined_call_operand.vmem [shape: bf16[2,8,32], index: 0, kind: input, shape index: {}]
  %s1 = inlined_call_operand.vmem [shape: f32[2,32], index: 1, kind: input, shape index: {}]
  %s2 = inlined_call_operand.vmem [shape: f32[32,128], index: 2, kind: input, shape index: {}]
  %s3 = inlined_call_operand.vmem [shape: f32[1,128], index: 3, kind: input, shape index: {}]
  %s4 = inlined_call_operand.hbm [shape: f32[2,128], index: 4, kind: output, shape index: {}]
  %s5 = sld [smem:[#allocation0]]
  $region34: #{role_aware_transformer_forward.19} parent=0
    _
  %s7 = ssub.s32 1, %s5
  %s8 = scalar_select 0, %s7, %s5
  $region1: #{role_aware_transformer_forward.19} parent=0
    #allocation3 [shape = 'u8[1024]{0}', space=vmem, size = 0x400, scoped, tag = 'output window, operand 0, single buffered']
    #allocation4 [shape = 's32[1]{0}', space=sflag, size = 0x4, scoped, tag = 'scoped memory for role_aware_transformer_forward.19']
    %9 = vsyncpa [#allocation4], 0
    // Predicated region
    $region2: #{role_aware_transformer_forward.19} parent=1 // pred_check
      _
    $region3: #{role_aware_transformer_forward.19} parent=1 // pred_check_branch
      %11 = sbr.rel (0) target = $region5
    $region4: #{role_aware_transformer_forward.19} parent=1 // pred_region
      _
    $region5: #{role_aware_transformer_forward.19} parent=1 // pred_fallthru
      _
    // Predicated region
    $region6: #{role_aware_transformer_forward.19} parent=1 // pred_check
      _
    $region7: #{role_aware_transformer_forward.19} parent=1 // pred_check_branch
      %13 = sbr.rel (0) target = $region9
    $region8: #{role_aware_transformer_forward.19} parent=1 // pred_region
      _
    $region9: #{role_aware_transformer_forward.19} parent=1 // pred_fallthru
      _
    // Predicated region
    $region10: #{role_aware_transformer_forward.19} parent=1 // pred_check
      _
    $region11: #{role_aware_transformer_forward.19} parent=1 // pred_check_branch
      %15 = sbr.rel (0) target = $region13
    $region12: #{role_aware_transformer_forward.19} parent=1 // pred_region
      _
    $region13: #{role_aware_transformer_forward.19} parent=1 // pred_fallthru
      _
    // Predicated region
    $region14: #{role_aware_transformer_forward.19} parent=1 // pred_check
      _
    $region15: #{role_aware_transformer_forward.19} parent=1 // pred_check_branch
      %17 = sbr.rel (0) target = $region17
    $region16: #{role_aware_transformer_forward.19} parent=1 // pred_region
      _
    $region17: #{role_aware_transformer_forward.19} parent=1 // pred_fallthru
      _
    %p18 = scmp.eq.s32.totalorder 0, 0
    // Predicated region
    $region18: #{role_aware_transformer_forward.19} parent=1 // pred_check
      %p19 = pneg %p18
    $region19: #{role_aware_transformer_forward.19} parent=1 // pred_check_branch
      %21 = sbr.rel (%p19) target = $region21
    $region20: #{role_aware_transformer_forward.19} parent=1 // pred_region
      %vm22 = vcmask 254976
      %23 = vst.msk [vmem:[#allocation2] sm:$0x3] %vm22, 0.0
    $region21: #{role_aware_transformer_forward.19} parent=1 // pred_fallthru
      _
    %v24 = vld [vmem:[#allocation2] sm:$0x3]
    %v25 = vld [vmem:[%s0] sm:$0xf]
    %v26 = vld [vmem:[%s0 + $0x4] sm:$0xf]
    %v27 = vunpack.c.l.bf16 %v25
    %v28 = vunpack.c.l.bf16 %v26
    %vm29 = vcmask 261120
    %v30 = vsel %vm29, %v27, 0.0
    %v31 = vrot.slane %v30, 4
    %v32 = vadd.f32 %v30, %v31
    %v33 = vrot.slane %v32, 2
    %v34 = vadd.f32 %v32, %v33
    %v35 = vrot.slane %v34, 1
    %v36 = vadd.f32 %v34, %v35
    %v37 = vsel %vm29, %v28, 0.0
    %v38 = vrot.slane %v37, 4
    %v39 = vadd.f32 %v37, %v38
    %v40 = vrot.slane %v39, 2
    %v41 = vadd.f32 %v39, %v40
    %v42 = vrot.slane %v41, 1
    %v43 = vadd.f32 %v41, %v42
    %vm46 = vcmask 1041409
    %v47 = vsel %vm46, %v43, %v36
    %v49 = vadd.f32 %v24, %v47
    %vm50 = vcmask 254976
    %51 = vst.msk [vmem:[#allocation2] sm:$0x3] %vm50, %v49
    // Predicated region
    $region22: #{role_aware_transformer_forward.19} parent=1 // pred_check
      %p52 = pneg %p18
    $region23: #{role_aware_transformer_forward.19} parent=1 // pred_check_branch
      %54 = sbr.rel (%p52) target = $region25
    $region24: #{role_aware_transformer_forward.19} parent=1 // pred_region
      %v55 = vld [vmem:[#allocation2] sm:$0x3]
      %v56 = vmul.f32 %v55, 0.125
      %v57 = vld [vmem:[%s1] sm:$0x3]
      %v58 = vadd.f32 %v56, %v57
      %v59 = vld [vmem:[%s2] sm:$0xff]
      %v60 = vld [vmem:[%s2 + $0x8] sm:$0xff]
      %v61 = vld [vmem:[%s2 + $0x10] sm:$0xff]
      %v62 = vld [vmem:[%s2 + $0x18] sm:$0xff]
      %v63 = vld [vmem:[%s3] sm:$0x1]
      %v65 = vperm.slane %v63, 0
      %v68 = vsel %vm29, %v58, 0
      %70 = vmatpush.msra.mxu0 0.0
      %71 = vmatpush.msra.mxu0 0.0
      %72 = vmatpush.msra.mxu0 0.0
      %73 = vmatpush.msra.mxu0 0.0
      %74 = vmatpush.msra.mxu0 0.0
      %75 = vmatpush.msra.mxu0 0.0
      %76 = vmatpush.msra.mxu0 0.0
      %77 = vmatpush.msra.mxu0 0.0
      %78 = vmatpush.msra.mxu0 0.0
      %79 = vmatpush.msra.mxu0 0.0
      %80 = vmatpush.msra.mxu0 0.0
      %81 = vmatpush.msra.mxu0 0.0
      %82 = vmatpush.msra.mxu0 %v62
      %83 = vmatpush.msra.mxu0 %v61
      %84 = vmatpush.msra.mxu0 %v60
      %85 = vmatpush.msra.mxu0 %v59
      %86 = vmatmul.f32.gmra.mxu0 %v68
      %v87 = vpop.f32.mrf.mxu0
      %v88 = vadd.f32 %v65, %v87
      %89 = vdwg.mxu0
      %90 = vst [vmem:[#allocation3] sm:$0x3] %v88
    $region25: #{role_aware_transformer_forward.19} parent=1 // pred_fallthru
      _
    // Predicated region
    $region26: #{role_aware_transformer_forward.19} parent=1 // pred_check
      _
    $region27: #{role_aware_transformer_forward.19} parent=1 // pred_check_branch
      %92 = sbr.rel (0) target = $region29
    $region28: #{role_aware_transformer_forward.19} parent=1 // pred_region
      %94 = vsyncadd [#allocation4], 0
      %s96 = sshll.u32 [#allocation3], 4
      %s97 = int_to_ptr.vmem [resolvable:$true] %s96
      %s98 = sshll.u32 %s4, 4
      %s99 = int_to_ptr.hbm [resolvable:$true] %s98
      %101 = dma.vmem_to_hbm [thread:$0]  %s97, 32, %s99, [#allocation4]
    $region29: #{role_aware_transformer_forward.19} parent=1 // pred_fallthru
      _
    // Predicated region
    $region30: #{role_aware_transformer_forward.19} parent=1 // pred_check
      _
    $region31: #{role_aware_transformer_forward.19} parent=1 // pred_check_branch
      %103 = sbr.rel (0) target = $region33
    $region32: #{role_aware_transformer_forward.19} parent=1 // pred_region
      %105 = dma.done [#allocation4], 32
    $region33: #{role_aware_transformer_forward.19} parent=1 // pred_fallthru
      _
    %106 = vsyncpa [#allocation4], 1

// kernel: role_aware_transformer_forward.14
$region0: #{role_aware_transformer_forward.14}
  #allocation0 [shape = 'u32[]', space=smem, size = 0x4, offset = 0x4, fixed_abs, tag = 'smem constant byte address 0x4 - core index']
  #allocation1 [shape = 'u32[72,128]{1,0:T(1,128)}', space=vmem, size = 0x9000, scoped, tag = 'internal scratch']
  #allocation2 [shape = 'f32[16,32]{1,0:T(8,128)}', space=vmem, size = 0x2000, scoped, tag = 'scratch operand']
  %s0 = inlined_call_operand.vmem [shape: bf16[16,32], index: 0, kind: input, shape index: {}]
  %s1 = inlined_call_operand.vmem [shape: bf16[32,64], index: 1, kind: input, shape index: {}]
  %s2 = inlined_call_operand.vmem [shape: f32[1,64], index: 2, kind: input, shape index: {}]
  %s3 = inlined_call_operand.vmem [shape: bf16[64,32], index: 3, kind: input, shape index: {}]
  %s4 = inlined_call_operand.vmem [shape: f32[1,32], index: 4, kind: input, shape index: {}]
  %s5 = inlined_call_operand.vmem [shape: f32[1,32], index: 5, kind: input, shape index: {}]
  %s6 = inlined_call_operand.vmem [shape: f32[1,32], index: 6, kind: input, shape index: {}]
  %s7 = inlined_call_operand.vmem [shape: bf16[16,32], index: 7, kind: output, shape index: {}]
  %s8 = sld [smem:[#allocation0]]
  $region46: #{role_aware_transformer_forward.14} parent=0
    _
  %s10 = ssub.s32 1, %s8
  %s11 = scalar_select 0, %s10, %s8
  // Predicated region
  $region2: #{role_aware_transformer_forward.14} parent=0 // pred_check
    _
  $region3: #{role_aware_transformer_forward.14} parent=0 // pred_check_branch
    %13 = sbr.rel (0) target = $region5
  $region4: #{role_aware_transformer_forward.14} parent=0 // pred_region
    _
  $region5: #{role_aware_transformer_forward.14} parent=0 // pred_fallthru
    _
  // Predicated region
  $region6: #{role_aware_transformer_forward.14} parent=0 // pred_check
    _
  $region7: #{role_aware_transformer_forward.14} parent=0 // pred_check_branch
    %15 = sbr.rel (0) target = $region9
  $region8: #{role_aware_transformer_forward.14} parent=0 // pred_region
    _
  $region9: #{role_aware_transformer_forward.14} parent=0 // pred_fallthru
    _
  // Predicated region
  $region10: #{role_aware_transformer_forward.14} parent=0 // pred_check
    _
  $region11: #{role_aware_transformer_forward.14} parent=0 // pred_check_branch
    %17 = sbr.rel (0) target = $region13
  $region12: #{role_aware_transformer_forward.14} parent=0 // pred_region
    _
  $region13: #{role_aware_transformer_forward.14} parent=0 // pred_fallthru
    _
  // Predicated region
  $region14: #{role_aware_transformer_forward.14} parent=0 // pred_check
    _
  $region15: #{role_aware_transformer_forward.14} parent=0 // pred_check_branch
    %19 = sbr.rel (0) target = $region17
  $region16: #{role_aware_transformer_forward.14} parent=0 // pred_region
    _
  $region17: #{role_aware_transformer_forward.14} parent=0 // pred_fallthru
    _
  // Predicated region
  $region18: #{role_aware_transformer_forward.14} parent=0 // pred_check
    _
  $region19: #{role_aware_transformer_forward.14} parent=0 // pred_check_branch
    %21 = sbr.rel (0) target = $region21
  $region20: #{role_aware_transformer_forward.14} parent=0 // pred_region
    _
  $region21: #{role_aware_transformer_forward.14} parent=0 // pred_fallthru
    _
  // Predicated region
  $region22: #{role_aware_transformer_forward.14} parent=0 // pred_check
    _
  $region23: #{role_aware_transformer_forward.14} parent=0 // pred_check_branch
    %23 = sbr.rel (0) target = $region25
  $region24: #{role_aware_transformer_forward.14} parent=0 // pred_region
    _
  $region25: #{role_aware_transformer_forward.14} parent=0 // pred_fallthru
    _
  // Predicated region
  $region26: #{role_aware_transformer_forward.14} parent=0 // pred_check
    _
  $region27: #{role_aware_transformer_forward.14} parent=0 // pred_check_branch
    %25 = sbr.rel (0) target = $region29
  $region28: #{role_aware_transformer_forward.14} parent=0 // pred_region
    _
  $region29: #{role_aware_transformer_forward.14} parent=0 // pred_fallthru
    _
  %p27 = scmp.eq.s32.totalorder 0, 0
  // Predicated region
  $region30: #{role_aware_transformer_forward.14} parent=0 // pred_check
    %p28 = pneg %p27
  $region31: #{role_aware_transformer_forward.14} parent=0 // pred_check_branch
    %30 = sbr.rel (%p28) target = $region33
  $region32: #{role_aware_transformer_forward.14} parent=0 // pred_region
    %vm31 = vcmask 261120
    %32 = vst.msk [vmem:[#allocation2] sm:$0xff] %vm31, 0.0
    %33 = vst.msk [vmem:[#allocation2 + $0x8] sm:$0xff] %vm31, 0.0
  $region33: #{role_aware_transformer_forward.14} parent=0 // pred_fallthru
    _
  %v34 = vld [vmem:[%s0] sm:$0xf]
  %v35 = vld [vmem:[%s0 + $0x4] sm:$0xf]
  %v36 = vld [vmem:[%s1] sm:$0xf]
  %v37 = vld [vmem:[%s1 + $0x4] sm:$0xf]
  %v38 = vld [vmem:[%s1 + $0x8] sm:$0xf]
  %v39 = vld [vmem:[%s1 + $0xc] sm:$0xf]
  %v40 = vld [vmem:[%s2] sm:$0x1]
  %v42 = vperm.slane %v40, 0
  %v46 = vunpack.c.l.b16 %v34
  %v47 = vunpack.c.l.b16 %v35
  %v48 = vpack.c.b16 %v47, %v46
  %v53 = vunpack.c.l.b16 %v36
  %v54 = vunpack.c.l.b16 %v37
  %v55 = vunpack.c.l.b16 %v38
  %v56 = vunpack.c.l.b16 %v39
  %v57 = vpack.c.b16 %v54, %v53
  %v58 = vpack.c.b16 %v56, %v55
  %vm61 = vcmask 261120
  %v63 = vsel %vm61, %v48, 0
  %65 = vmatpush.bf16.msra.mxu0 0
  %66 = vmatpush.bf16.msra.mxu0 0
  %67 = vmatpush.bf16.msra.mxu0 0
  %68 = vmatpush.bf16.msra.mxu0 0
  %69 = vmatpush.bf16.msra.mxu0 0
  %70 = vmatpush.bf16.msra.mxu0 0
  %71 = vmatpush.bf16.msra.mxu0 %v58
  %72 = vmatpush.bf16.msra.mxu0 %v57
  %73 = vmatmul.bf16.gmra.mxu0 %v63
  %v74 = vpop.f32.mrf.mxu0
  %v75 = vadd.f32 %v42, %v74
  %v76 = vpop.f32.mrf.mxu0
  %v77 = vadd.f32 %v42, %v76
  %78 = vdwg.mxu0
  %v79 = vmul.f32 %v75, %v75
  %v80 = vmul.f32 %v77, %v77
  %v81 = vmul.f32 %v75, %v79
  %v82 = vmul.f32 %v77, %v80
  %v83 = vmul.f32 %v81, 0.044715
  %v84 = vmul.f32 %v82, 0.044715
  %v85 = vadd.f32 %v75, %v83
  %v86 = vadd.f32 %v77, %v84
  %v87 = vmul.f32 %v85, 0.7978846
  %v88 = vmul.f32 %v86, 0.7978846
  %v89 = vtanh.pop %v87
  %v90 = vtanh.pop %v88
  %v91 = vadd.f32 %v89, 1.0
  %v92 = vadd.f32 %v90, 1.0
  %v93 = vmul.f32 %v91, 0.5
  %v94 = vmul.f32 %v92, 0.5
  %v95 = vmul.f32 %v75, %v93
  %v96 = vmul.f32 %v77, %v94
  %v97 = vld [vmem:[#allocation2] sm:$0xff]
  %v98 = vld [vmem:[#allocation2 + $0x8] sm:$0xff]
  %v99 = vpack.c.bf16 %v96, %v95
  %v100 = vld [vmem:[%s3] sm:$0xf]
  %v101 = vld [vmem:[%s3 + $0x4] sm:$0xf]
  %v102 = vld [vmem:[%s3 + $0x8] sm:$0xf]
  %v103 = vld [vmem:[%s3 + $0xc] sm:$0xf]
  %v104 = vld [vmem:[%s3 + $0x10] sm:$0xf]
  %v105 = vld [vmem:[%s3 + $0x14] sm:$0xf]
  %v106 = vld [vmem:[%s3 + $0x18] sm:$0xf]
  %v107 = vld [vmem:[%s3 + $0x1c] sm:$0xf]
  %v116 = vunpack.c.l.b16 %v100
  %v117 = vunpack.c.l.b16 %v101
  %v118 = vunpack.c.l.b16 %v102
  %v119 = vunpack.c.l.b16 %v103
  %v120 = vunpack.c.l.b16 %v104
  %v121 = vunpack.c.l.b16 %v105
  %v122 = vunpack.c.l.b16 %v106
  %v123 = vunpack.c.l.b16 %v107
  %v124 = vpack.c.b16 %v117, %v116
  %v125 = vpack.c.b16 %v119, %v118
  %v126 = vpack.c.b16 %v121, %v120
  %v127 = vpack.c.b16 %v123, %v122
  %vm132 = vcmask 523264
  %v134 = vsel %vm132, %v99, 0
  %136 = vmatpush.bf16.msra.mxu0 0
  %137 = vmatpush.bf16.msra.mxu0 0
  %138 = vmatpush.bf16.msra.mxu0 0
  %139 = vmatpush.bf16.msra.mxu0 0
  %140 = vmatpush.bf16.msra.mxu0 %v127
  %141 = vmatpush.bf16.msra.mxu0 %v126
  %142 = vmatpush.bf16.msra.mxu0 %v125
  %143 = vmatpush.bf16.msra.mxu0 %v124
  %144 = vmatmul.bf16.gmra.mxu0 %v134
  %v145 = vpop.f32.mrf.mxu0
  %v146 = vadd.f32 0.0, %v145
  %v147 = vpop.f32.mrf.mxu0
  %v148 = vadd.f32 0.0, %v147
  %149 = vdwg.mxu0
  %v150 = vadd.f32 %v97, %v146
  %v151 = vadd.f32 %v98, %v148
  %152 = vst.msk [vmem:[#allocation2] sm:$0xff] %vm61, %v150
  %153 = vst.msk [vmem:[#allocation2 + $0x8] sm:$0xff] %vm61, %v151
  // Predicated region
  $region34: #{role_aware_transformer_forward.14} parent=0 // pred_check
    %p154 = pneg %p27
  $region35: #{role_aware_transformer_forward.14} parent=0 // pred_check_branch
    %156 = sbr.rel (%p154) target = $region37
  $region36: #{role_aware_transformer_forward.14} parent=0 // pred_region
    %v157 = vld [vmem:[#allocation2] sm:$0xff]
    %v158 = vld [vmem:[#allocation2 + $0x8] sm:$0xff]
    %v159 = vld [vmem:[%s4] sm:$0x1]
    %v161 = vperm.slane %v159, 0
    %v163 = vadd.f32 %v157, %v161
    %v164 = vadd.f32 %v158, %v161
    %v165 = vunpack.c.l.bf16 %v34
    %v166 = vunpack.c.l.bf16 %v35
    %v167 = vadd.f32 %v163, %v165
    %v168 = vadd.f32 %v164, %v166
    %v169 = vsel %vm61, %v167, 0.0
    %170 = vadd.xlane.f32.xlu0 %v169
    %v171 = vpop.xlane.xlu0 %170
    %v172 = vsel %vm61, %v168, 0.0
    %173 = vadd.xlane.f32.xlu0 %v172
    %v174 = vpop.xlane.xlu0 %173
    %v175 = vrcp.pop 32.0
    %v176 = vmul.f32 32.0, %v175
    %v177 = vsub.f32 1.0, %v176
    %v178 = vmul.f32 %v175, %v177
    %v179 = vadd.f32 %v175, %v178
    %vm180 = vweird.f32 %v175
    %v181 = vsel %vm180, %v175, %v179
    %v182 = vmul.f32 %v171, %v181
    %v183 = vmul.f32 %v174, %v181
    %v184 = vsub.f32 %v167, %v182
    %v185 = vsub.f32 %v168, %v183
    %v186 = vmul.f32 %v184, %v184
    %v187 = vmul.f32 %v185, %v185
    %v188 = vsel %vm61, %v186, 0.0
    %189 = vadd.xlane.f32.xlu0 %v188
    %v190 = vpop.xlane.xlu0 %189
    %v191 = vsel %vm61, %v187, 0.0
    %192 = vadd.xlane.f32.xlu0 %v191
    %v193 = vpop.xlane.xlu0 %192
    %v194 = vmul.f32 %v190, %v181
    %v195 = vmul.f32 %v193, %v181
    %v196 = vadd.f32 %v194, 1e-12
    %v197 = vadd.f32 %v195, 1e-12
    %v198 = vrsqrt.pop %v196
    %v199 = vmul.f32 %v198, %v196
    %v200 = vmul.f32 %v199, %v198
    %v201 = vmul.f32 0.5, %v200
    %v202 = vsub.f32 1.5, %v201
    %v203 = vmul.f32 %v198, %v202
    %vm204 = vweird.f32 %v196
    %vm205 = vweird.f32 %v198
    %vm206 = vmor %vm204, %vm205
    %v207 = vsel %vm206, %v198, %v203
    %v208 = vrsqrt.pop %v197
    %v209 = vmul.f32 %v208, %v197
    %v210 = vmul.f32 %v209, %v208
    %v211 = vmul.f32 0.5, %v210
    %v212 = vsub.f32 1.5, %v211
    %v213 = vmul.f32 %v208, %v212
    %vm214 = vweird.f32 %v197
    %vm215 = vweird.f32 %v208
    %vm216 = vmor %vm214, %vm215
    %v217 = vsel %vm216, %v208, %v213
    %v218 = vmul.f32 %v184, %v207
    %v219 = vmul.f32 %v185, %v217
    %v220 = vld [vmem:[%s5] sm:$0x1]
    %v222 = vperm.slane %v220, 0
    %v224 = vmul.f32 %v218, %v222
    %v225 = vmul.f32 %v219, %v222
    %v226 = vld [vmem:[%s6] sm:$0x1]
    %v228 = vperm.slane %v226, 0
    %v230 = vadd.f32 %v224, %v228
    %v231 = vadd.f32 %v225, %v228
    %v232 = vpack.c.bf16 %v230, %v230
    %v233 = vpack.c.bf16 %v231, %v231
    %vm234 = vcmask 257024
    %235 = vst.msk [vmem:[%s7] sm:$0xf] %vm234, %v232
    %236 = vst.msk [vmem:[%s7 + $0x4] sm:$0xf] %vm234, %v233
  $region37: #{role_aware_transformer_forward.14} parent=0 // pred_fallthru
    _
  // Predicated region
  $region38: #{role_aware_transformer_forward.14} parent=0 // pred_check
    _
  $region39: #{role_aware_transformer_forward.14} parent=0 // pred_check_branch
    %238 = sbr.rel (0) target = $region41
  $region40: #{role_aware_transformer_forward.14} parent=0 // pred_region
    _
  $region41: #{role_aware_transformer_forward.14} parent=0 // pred_fallthru
    _
  // Predicated region
  $region42: #{role_aware_transformer_forward.14} parent=0 // pred_check
    _
  $region43: #{role_aware_transformer_forward.14} parent=0 // pred_check_branch
    %240 = sbr.rel (0) target = $region45
  $region44: #{role_aware_transformer_forward.14} parent=0 // pred_region
    _
  $region45: #{role_aware_transformer_forward.14} parent=0 // pred_fallthru
    _

</llo_original>
